<compile_context>
chip_gen: v6e
topology: v6e:2x2x1
jax: 0.10.0
libtpu: 0.0.40
codegen_flags: <defaults>
</compile_context>

<pallas_src>
import functools
import math

import jax
import jax.numpy as jnp
from jax.experimental import pallas as pl
from jax.experimental.pallas import tpu as pltpu


# ----------------------------------------------------------------------------
# Kernel
# ----------------------------------------------------------------------------
def _layernorm(z, gamma, beta, eps=1e-5):
    # single-pass: var = E[z^2] - mu^2 (one read of z instead of two)
    mu = jnp.mean(z, axis=-1, keepdims=True)
    msq = jnp.mean(z * z, axis=-1, keepdims=True)
    var = msq - mu * mu
    return (z - mu) * jax.lax.rsqrt(var + eps) * gamma + beta


def fused_kernel(x_ref, mask_ref,
                 wq_ref, bq_ref, wk_ref, bk_ref, wv_ref, bv_ref,
                 wo_ref, bo_ref, g1_ref, be1_ref, g2_ref, be2_ref,
                 w1_ref, b1_ref, w2_ref, b2_ref,
                 gf_ref, bef_ref, wf_ref, bf_ref,
                 out_ref, x_scr, attn_scr, *, num_heads):
    """grid = (batch_block, layer).  Activations carried in x_scr across layers;
    final LayerNorm + classifier fused into the last layer step."""
    l = pl.program_id(1)
    last = pl.num_programs(1) - 1

    Bb, S, D = x_ref.shape
    N = Bb * S
    H = num_heads
    hd = D // H
    scale = 1.0 / math.sqrt(hd)
    bf16 = jnp.bfloat16

    # Load the embedded inputs into the resident activation buffer once.
    @pl.when(l == 0)
    def _load():
        x_scr[...] = x_ref[...].reshape(N, D)

    x = x_scr[...]                          # (N, D) f32 residual stream
    xb = x.astype(bf16)

    # --- fused lane-dense QKV projections (bf16 operands, f32 accumulate) ----
    q = jnp.dot(xb, wq_ref[0], preferred_element_type=jnp.float32) + bq_ref[0]
    k = jnp.dot(xb, wk_ref[0], preferred_element_type=jnp.float32) + bk_ref[0]
    v = jnp.dot(xb, wv_ref[0], preferred_element_type=jnp.float32) + bv_ref[0]

    # additive key-padding mask, broadcast hoisted out of the head loop
    mask_full = jnp.broadcast_to(mask_ref[...], (Bb, S, S))

    # --- per-head attention: scores / softmax / PV --------------------------
    # Head outputs are packed into a lane-dense (N, D) scratch so the
    # out-projection below is ONE fat (N,D)x(D,D) dot (no per-head rank-hd
    # accumulation, no concatenate).
    # TODO(synk): for production H (>=8) switch this static unroll to a
    # lax.fori_loop over a head-stacked scratch to bound traced code size.
    for h in range(H):
        sl = slice(h * hd, (h + 1) * hd)
        q3 = q[:, sl].reshape(Bb, S, hd).astype(bf16)
        k3 = k[:, sl].reshape(Bb, S, hd).astype(bf16)
        v3 = v[:, sl].reshape(Bb, S, hd).astype(bf16)

        s = jnp.einsum('bqd,bkd->bqk', q3, k3,
                       preferred_element_type=jnp.float32) * scale + mask_full
        s = s - jnp.max(s, axis=-1, keepdims=True)
        p = jnp.exp(s)                              # unnormalized, f32
        denom = jnp.sum(p, axis=-1, keepdims=True)

        o3 = jnp.einsum('bqk,bkd->bqd', p.astype(bf16), v3,
                        preferred_element_type=jnp.float32)
        # normalize AFTER the PV matmul: S*hd multiplies instead of S*S
        o3 = o3 * pl.reciprocal(denom, approx=True)
        attn_scr[:, sl] = o3.reshape(N, hd)

    # --- single fat out-projection -------------------------------------------
    attn = jnp.dot(attn_scr[...].astype(bf16), wo_ref[0],
                   preferred_element_type=jnp.float32) + bo_ref[0]

    # --- residual + LayerNorm 1 -----------------------------------------------
    h1 = _layernorm(x + attn, g1_ref[0], be1_ref[0])

    # --- feed-forward (ReLU) ---------------------------------------------------
    ff = jnp.dot(h1.astype(bf16), w1_ref[0],
                 preferred_element_type=jnp.float32) + b1_ref[0]
    ff = jnp.maximum(ff, 0.0)
    ff = jnp.dot(ff.astype(bf16), w2_ref[0],
                 preferred_element_type=jnp.float32) + b2_ref[0]

    # --- residual + LayerNorm 2 -> carry to next layer -------------------------
    y = _layernorm(h1 + ff, g2_ref[0], be2_ref[0])
    x_scr[...] = y

    # --- final encoder LayerNorm + classifier (lane-dense padded output) ------
    @pl.when(l == last)
    def _head():
        z = _layernorm(y, gf_ref[...], bef_ref[...])
        logits = jnp.dot(z.astype(bf16), wf_ref[...],
                         preferred_element_type=jnp.float32) + bf_ref[...]
        out_ref[...] = logits.reshape(Bb, S, logits.shape[-1])


# ----------------------------------------------------------------------------
# Wrapper (single pallas_call for the whole stack)
# ----------------------------------------------------------------------------
def run_fused(x, add_mask, lp, hp, *, num_heads, b_blk=None):
    B, S, D = x.shape
    L = lp["wq"].shape[0]
    F = lp["w1"].shape[2]           # FFN hidden
    OP = hp["wf"].shape[1]          # padded classifier width (multiple of 128)

    if b_blk is None:
        # As large as possible (amortizes the per-batch-block layer-weight
        # restream) but with >= 2 batch blocks so both v7x TensorCores get work.
        cap = min(B, 16)
        if B >= 2:
            cap = min(cap, max(1, B // 2))
        b_blk = max(d for d in range(1, cap + 1) if B % d == 0)
    assert B % b_blk == 0
    grid = (B // b_blk, L)

    act = pl.BlockSpec((b_blk, S, D), lambda b, l: (b, 0, 0))
    msk = pl.BlockSpec((b_blk, 1, S), lambda b, l: (b, 0, 0))
    out = pl.BlockSpec((b_blk, S, OP), lambda b, l: (b, 0, 0))
    lay = lambda shp: pl.BlockSpec((1,) + shp,
                                   lambda b, l, _n=len(shp): (l,) + (0,) * _n)
    fix = lambda shp: pl.BlockSpec(shp,
                                   lambda b, l, _n=len(shp): (0,) * _n)

    # Explicit VMEM budget: double-buffered bf16 layer weights + resident
    # activations / scratches, with headroom; clamped to the v7x 64 MiB cap.
    n = b_blk * S
    w_bytes = 2 * ((4 * D * D + 2 * D * F) * 2 + (9 * D + F) * 4)
    act_bytes = 2 * (n * D * 4 + b_blk * S * 4) + 2 * n * OP * 4
    head_bytes = 2 * (D * OP * 2 + OP * 4 + 2 * D * 4)
    scr_bytes = 2 * n * D * 4
    est = int(1.5 * (w_bytes + act_bytes + head_bytes + scr_bytes))
    vmem_limit = max(32 * 1024 * 1024, min(est, 64 * 1024 * 1024))

    # TODO(synk): at production sizes pad D (e.g. 200 -> 256) and F to lane
    # multiples in the wrapper (with LN statistics restricted to the real D)
    # to keep every tile lane-dense.
    return pl.pallas_call(
        functools.partial(fused_kernel, num_heads=num_heads),
        out_shape=jax.ShapeDtypeStruct((B, S, OP), jnp.float32),
        grid=grid,
        in_specs=[
            act, msk,
            lay((D, D)), lay((1, D)),           # wq, bq  (fused, lane-dense)
            lay((D, D)), lay((1, D)),           # wk, bk
            lay((D, D)), lay((1, D)),           # wv, bv
            lay((D, D)), lay((1, D)),           # wo, bo
            lay((1, D)), lay((1, D)),           # ln1 gamma, beta
            lay((1, D)), lay((1, D)),           # ln2 gamma, beta
            lay((D, F)), lay((1, F)),           # ffn w1, b1
            lay((F, D)), lay((1, D)),           # ffn w2, b2
            fix((1, D)), fix((1, D)),           # final LN gamma, beta
            fix((D, OP)), fix((1, OP)),         # classifier (padded)
        ],
        out_specs=out,
        scratch_shapes=[pltpu.VMEM((b_blk * S, D), jnp.float32),   # residual stream
                        pltpu.VMEM((b_blk * S, D), jnp.float32)],  # packed head outs
        compiler_params=pltpu.CompilerParams(
            dimension_semantics=("parallel", "arbitrary"),
            vmem_limit_bytes=vmem_limit),
    )(x, add_mask,
      lp["wq"], lp["bq"], lp["wk"], lp["bk"], lp["wv"], lp["bv"],
      lp["wo"], lp["bo"], lp["g1"], lp["be1"], lp["g2"], lp["be2"],
      lp["w1"], lp["b1"], lp["w2"], lp["b2"],
      hp["gf"], hp["bef"], hp["wf"], hp["bf"])


# ----------------------------------------------------------------------------
# Model glue (embedding, positional encoding, parameter init)
# ----------------------------------------------------------------------------
def positional_encoding(seq_len, d_model):
    assert d_model % 2 == 0
    position = jnp.arange(seq_len, dtype=jnp.float32)[:, None]
    div_term = jnp.exp(jnp.arange(0, d_model, 2, dtype=jnp.float32)
                       * (-jnp.log(10000.0) / d_model))
    pe = jnp.zeros((seq_len, d_model), dtype=jnp.float32)
    pe = pe.at[:, 0::2].set(jnp.sin(position * div_term))
    pe = pe.at[:, 1::2].set(jnp.cos(position * div_term))
    return pe


def init_params(key, vocab_size, d_model, num_heads, hidden_dim,
                num_layers, output_dim, padding_idx):
    del num_heads  # weights are stored head-fused (lane-dense)
    k_emb, k_layers, k_fc = jax.random.split(key, 3)

    # "GloVe-like" embedding: uniform(-0.25, 0.25), padding row zeroed.
    emb = jax.random.uniform(k_emb, (vocab_size, d_model),
                             minval=-0.25, maxval=0.25, dtype=jnp.float32)
    emb = emb.at[padding_idx].set(0.0)

    def lin(k, shape, scale=0.05):
        return scale * jax.random.normal(k, shape, dtype=jnp.float32)

    wq_l, wk_l, wv_l, wo_l, w1_l, w2_l = [], [], [], [], [], []
    for l in range(num_layers):
        ks = jax.random.split(jax.random.fold_in(k_layers, l), 6)
        wq_l.append(lin(ks[0], (d_model, d_model)))
        wk_l.append(lin(ks[1], (d_model, d_model)))
        wv_l.append(lin(ks[2], (d_model, d_model)))
        wo_l.append(lin(ks[3], (d_model, d_model)))
        w1_l.append(lin(ks[4], (d_model, hidden_dim)))
        w2_l.append(lin(ks[5], (hidden_dim, d_model)))

    L = num_layers
    bf16 = jnp.bfloat16
    layers = dict(
        # bf16 weight storage: halves per-layer weight DMA + VMEM double-buffer
        wq=jnp.stack(wq_l).astype(bf16), bq=jnp.zeros((L, 1, d_model), jnp.float32),
        wk=jnp.stack(wk_l).astype(bf16), bk=jnp.zeros((L, 1, d_model), jnp.float32),
        wv=jnp.stack(wv_l).astype(bf16), bv=jnp.zeros((L, 1, d_model), jnp.float32),
        wo=jnp.stack(wo_l).astype(bf16), bo=jnp.zeros((L, 1, d_model), jnp.float32),
        g1=jnp.ones((L, 1, d_model), jnp.float32), be1=jnp.zeros((L, 1, d_model), jnp.float32),
        g2=jnp.ones((L, 1, d_model), jnp.float32), be2=jnp.zeros((L, 1, d_model), jnp.float32),
        w1=jnp.stack(w1_l).astype(bf16), b1=jnp.zeros((L, 1, hidden_dim), jnp.float32),
        w2=jnp.stack(w2_l).astype(bf16), b2=jnp.zeros((L, 1, d_model), jnp.float32),
    )

    # classifier padded to a lane-dense (multiple of 128) output width
    o_pad = ((output_dim + 127) // 128) * 128
    wf = jnp.zeros((d_model, o_pad), jnp.float32)
    wf = wf.at[:, :output_dim].set(lin(k_fc, (d_model, output_dim)))
    head = dict(
        gf=jnp.ones((1, d_model), jnp.float32),
        bef=jnp.zeros((1, d_model), jnp.float32),
        wf=wf.astype(bf16),
        bf=jnp.zeros((1, o_pad), jnp.float32),
    )
    return emb, layers, head


def stransformer_e_forward(tokens, emb, layers, head, *, num_heads,
                           padding_idx, output_dim, b_blk=None):
    B, S = tokens.shape
    D = emb.shape[1]

    # Embedding gather + positional encoding: plain-JAX glue (no tiled hot path).
    embedded = jnp.take(emb, tokens, axis=0) + positional_encoding(S, D)[None]
    # Dropout is identity in eval mode.

    # key_padding_mask -> additive mask over keys (0 / -1e9).
    add_mask = jnp.where(tokens == padding_idx, -1e9, 0.0).astype(jnp.float32)
    add_mask = add_mask.reshape(B, 1, S)

    logits_pad = run_fused(embedded.astype(jnp.float32), add_mask, layers, head,
                           num_heads=num_heads, b_blk=b_blk)   # (B, S, 128*k)
    return logits_pad[..., :output_dim]


# ----------------------------------------------------------------------------
if __name__ == "__main__":
    B, S = 2, 8
    vocab_size = 20
    embedding_dim = 32
    num_heads = 4
    hidden_dim = 64
    num_layers = 2
    output_dim = 8
    padding_idx = 0

    key = jax.random.PRNGKey(0)
    k_tok, k_param = jax.random.split(key)

    emb, layers, head = init_params(k_param, vocab_size, embedding_dim,
                                    num_heads, hidden_dim, num_layers,
                                    output_dim, padding_idx)

    # deterministic token ids with trailing padding to exercise the mask
    tokens = jax.random.randint(k_tok, (B, S), 1, vocab_size, dtype=jnp.int32)
    tokens = tokens.at[0, 6:].set(padding_idx)
    tokens = tokens.at[1, 5:].set(padding_idx)

    logits = stransformer_e_forward(tokens, emb, layers, head,
                                    num_heads=num_heads,
                                    padding_idx=padding_idx,
                                    output_dim=output_dim)
    logits = jax.block_until_ready(logits)

    assert logits.shape == (B, S, output_dim)
    assert bool(jnp.all(jnp.isfinite(logits)))
    print("KERNEL_OK")
</pallas_src>

<mosaic_0001>
module attributes {stable_mosaic.version = 11 : i64} {
  func.func @fused_kernel(%arg0: i32, %arg1: i32, %arg2: memref<1x8x32xf32, #tpu.memory_space<vmem>>, %arg3: memref<1x1x8xf32, #tpu.memory_space<vmem>>, %arg4: memref<1x32x32xbf16, #tpu.memory_space<vmem>>, %arg5: memref<1x1x32xf32, #tpu.memory_space<vmem>>, %arg6: memref<1x32x32xbf16, #tpu.memory_space<vmem>>, %arg7: memref<1x1x32xf32, #tpu.memory_space<vmem>>, %arg8: memref<1x32x32xbf16, #tpu.memory_space<vmem>>, %arg9: memref<1x1x32xf32, #tpu.memory_space<vmem>>, %arg10: memref<1x32x32xbf16, #tpu.memory_space<vmem>>, %arg11: memref<1x1x32xf32, #tpu.memory_space<vmem>>, %arg12: memref<1x1x32xf32, #tpu.memory_space<vmem>>, %arg13: memref<1x1x32xf32, #tpu.memory_space<vmem>>, %arg14: memref<1x1x32xf32, #tpu.memory_space<vmem>>, %arg15: memref<1x1x32xf32, #tpu.memory_space<vmem>>, %arg16: memref<1x32x64xbf16, #tpu.memory_space<vmem>>, %arg17: memref<1x1x64xf32, #tpu.memory_space<vmem>>, %arg18: memref<1x64x32xbf16, #tpu.memory_space<vmem>>, %arg19: memref<1x1x32xf32, #tpu.memory_space<vmem>>, %arg20: memref<1x32xf32, #tpu.memory_space<vmem>>, %arg21: memref<1x32xf32, #tpu.memory_space<vmem>>, %arg22: memref<32x128xbf16, #tpu.memory_space<vmem>>, %arg23: memref<1x128xf32, #tpu.memory_space<vmem>>, %arg24: memref<1x8x128xf32, #tpu.memory_space<vmem>>, %arg25: memref<8x32xf32, #tpu.memory_space<vmem>>, %arg26: memref<8x32xf32, #tpu.memory_space<vmem>>) attributes {dimension_semantics = [#tpu.dimension_semantics<parallel>, #tpu.dimension_semantics<arbitrary>], iteration_bounds = array<i64: 2, 2>, scalar_prefetch = 0 : i64, scratch_operands = 2 : i64, tpu.core_type = #tpu.core_type<tc>, window_params = [{transform_indices = @transform_0, window_bounds = array<i64: 1, 8, 32>}, {transform_indices = @transform_1, window_bounds = array<i64: 1, 1, 8>}, {transform_indices = @transform_2, window_bounds = array<i64: 1, 32, 32>}, {transform_indices = @transform_3, window_bounds = array<i64: 1, 1, 32>}, {transform_indices = @transform_4, window_bounds = array<i64: 1, 32, 32>}, {transform_indices = @transform_5, window_bounds = array<i64: 1, 1, 32>}, {transform_indices = @transform_6, window_bounds = array<i64: 1, 32, 32>}, {transform_indices = @transform_7, window_bounds = array<i64: 1, 1, 32>}, {transform_indices = @transform_8, window_bounds = array<i64: 1, 32, 32>}, {transform_indices = @transform_9, window_bounds = array<i64: 1, 1, 32>}, {transform_indices = @transform_10, window_bounds = array<i64: 1, 1, 32>}, {transform_indices = @transform_11, window_bounds = array<i64: 1, 1, 32>}, {transform_indices = @transform_12, window_bounds = array<i64: 1, 1, 32>}, {transform_indices = @transform_13, window_bounds = array<i64: 1, 1, 32>}, {transform_indices = @transform_14, window_bounds = array<i64: 1, 32, 64>}, {transform_indices = @transform_15, window_bounds = array<i64: 1, 1, 64>}, {transform_indices = @transform_16, window_bounds = array<i64: 1, 64, 32>}, {transform_indices = @transform_17, window_bounds = array<i64: 1, 1, 32>}, {pipeline_mode = #tpu.pipeline_mode<synchronous>, transform_indices = @transform_18, window_bounds = array<i64: 1, 32>}, {pipeline_mode = #tpu.pipeline_mode<synchronous>, transform_indices = @transform_19, window_bounds = array<i64: 1, 32>}, {pipeline_mode = #tpu.pipeline_mode<synchronous>, transform_indices = @transform_20, window_bounds = array<i64: 32, 128>}, {pipeline_mode = #tpu.pipeline_mode<synchronous>, transform_indices = @transform_21, window_bounds = array<i64: 1, 128>}, {transform_indices = @transform_22, window_bounds = array<i64: 1, 8, 128>}]} {
    %c0_i32 = arith.constant 0 : i32
    %0 = arith.cmpi eq, %arg1, %c0_i32 : i32
    %1 = arith.extui %0 : i1 to i32
    %c0_i32_0 = arith.constant 0 : i32
    %2 = arith.cmpi ne, %1, %c0_i32_0 : i32
    scf.if %2 {
      %c0_99 = arith.constant 0 : index
      %c0_100 = arith.constant 0 : index
      %c0_101 = arith.constant 0 : index
      %222 = vector.load %arg2[%c0_99, %c0_100, %c0_101] : memref<1x8x32xf32, #tpu.memory_space<vmem>>, vector<1x8x32xf32>
      %223 = vector.shape_cast %222 : vector<1x8x32xf32> to vector<8x32xf32>
      %c0_102 = arith.constant 0 : index
      %c0_103 = arith.constant 0 : index
      %224 = vector.load %arg25[%c0_102, %c0_103] : memref<8x32xf32, #tpu.memory_space<vmem>>, vector<8x32xf32>
      tpu.vector_store %arg25[%c0_102, %c0_103], %223 {strides = array<i32>} : memref<8x32xf32, #tpu.memory_space<vmem>>, vector<8x32xf32>,
    } else {
    }
    %c0 = arith.constant 0 : index
    %c0_1 = arith.constant 0 : index
    %3 = vector.load %arg25[%c0, %c0_1] : memref<8x32xf32, #tpu.memory_space<vmem>>, vector<8x32xf32>
    %4 = arith.truncf %3 : vector<8x32xf32> to vector<8x32xbf16>
    %c0_2 = arith.constant 0 : index
    %c0_3 = arith.constant 0 : index
    %c0_4 = arith.constant 0 : index
    %5 = vector.load %arg4[%c0_2, %c0_3, %c0_4] : memref<1x32x32xbf16, #tpu.memory_space<vmem>>, vector<1x32x32xbf16>
    %6 = vector.shape_cast %5 : vector<1x32x32xbf16> to vector<32x32xbf16>
    %cst = arith.constant dense<0.000000e+00> : vector<8x32xf32>
    %7 = tpu.matmul %4, %6, %cst {dimension_numbers = #tpu.dot_dimension_numbers<[1], [0], [0], [1], [0, 0, 1, 1], [], []>} : vector<8x32xbf16>, vector<32x32xbf16>, vector<8x32xf32> -> vector<8x32xf32>
    %c0_5 = arith.constant 0 : index
    %c0_6 = arith.constant 0 : index
    %c0_7 = arith.constant 0 : index
    %8 = vector.load %arg5[%c0_5, %c0_6, %c0_7] : memref<1x1x32xf32, #tpu.memory_space<vmem>>, vector<1x1x32xf32>
    %9 = vector.shape_cast %8 : vector<1x1x32xf32> to vector<1x32xf32>
    %10 = vector.broadcast %9 : vector<1x32xf32> to vector<8x32xf32>
    %11 = arith.addf %7, %10 : vector<8x32xf32>
    %c0_8 = arith.constant 0 : index
    %c0_9 = arith.constant 0 : index
    %c0_10 = arith.constant 0 : index
    %12 = vector.load %arg6[%c0_8, %c0_9, %c0_10] : memref<1x32x32xbf16, #tpu.memory_space<vmem>>, vector<1x32x32xbf16>
    %13 = vector.shape_cast %12 : vector<1x32x32xbf16> to vector<32x32xbf16>
    %cst_11 = arith.constant dense<0.000000e+00> : vector<8x32xf32>
    %14 = tpu.matmul %4, %13, %cst_11 {dimension_numbers = #tpu.dot_dimension_numbers<[1], [0], [0], [1], [0, 0, 1, 1], [], []>} : vector<8x32xbf16>, vector<32x32xbf16>, vector<8x32xf32> -> vector<8x32xf32>
    %c0_12 = arith.constant 0 : index
    %c0_13 = arith.constant 0 : index
    %c0_14 = arith.constant 0 : index
    %15 = vector.load %arg7[%c0_12, %c0_13, %c0_14] : memref<1x1x32xf32, #tpu.memory_space<vmem>>, vector<1x1x32xf32>
    %16 = vector.shape_cast %15 : vector<1x1x32xf32> to vector<1x32xf32>
    %17 = vector.broadcast %16 : vector<1x32xf32> to vector<8x32xf32>
    %18 = arith.addf %14, %17 : vector<8x32xf32>
    %c0_15 = arith.constant 0 : index
    %c0_16 = arith.constant 0 : index
    %c0_17 = arith.constant 0 : index
    %19 = vector.load %arg8[%c0_15, %c0_16, %c0_17] : memref<1x32x32xbf16, #tpu.memory_space<vmem>>, vector<1x32x32xbf16>
    %20 = vector.shape_cast %19 : vector<1x32x32xbf16> to vector<32x32xbf16>
    %cst_18 = arith.constant dense<0.000000e+00> : vector<8x32xf32>
    %21 = tpu.matmul %4, %20, %cst_18 {dimension_numbers = #tpu.dot_dimension_numbers<[1], [0], [0], [1], [0, 0, 1, 1], [], []>} : vector<8x32xbf16>, vector<32x32xbf16>, vector<8x32xf32> -> vector<8x32xf32>
    %c0_19 = arith.constant 0 : index
    %c0_20 = arith.constant 0 : index
    %c0_21 = arith.constant 0 : index
    %22 = vector.load %arg9[%c0_19, %c0_20, %c0_21] : memref<1x1x32xf32, #tpu.memory_space<vmem>>, vector<1x1x32xf32>
    %23 = vector.shape_cast %22 : vector<1x1x32xf32> to vector<1x32xf32>
    %24 = vector.broadcast %23 : vector<1x32xf32> to vector<8x32xf32>
    %25 = arith.addf %21, %24 : vector<8x32xf32>
    %c0_22 = arith.constant 0 : index
    %c0_23 = arith.constant 0 : index
    %c0_24 = arith.constant 0 : index
    %26 = vector.load %arg3[%c0_22, %c0_23, %c0_24] : memref<1x1x8xf32, #tpu.memory_space<vmem>>, vector<1x1x8xf32>
    %27 = vector.shape_cast %26 : vector<1x1x8xf32> to vector<1x1x8xf32>
    %28 = vector.broadcast %27 : vector<1x1x8xf32> to vector<1x8x8xf32>
    %29 = vector.extract_strided_slice %11 {offsets = [0, 0], sizes = [8, 8], strides = [1, 1]} : vector<8x32xf32> to vector<8x8xf32>
    %30 = vector.shape_cast %29 : vector<8x8xf32> to vector<1x8x8xf32>
    %31 = arith.truncf %30 : vector<1x8x8xf32> to vector<1x8x8xbf16>
    %32 = vector.extract_strided_slice %18 {offsets = [0, 0], sizes = [8, 8], strides = [1, 1]} : vector<8x32xf32> to vector<8x8xf32>
    %33 = vector.shape_cast %32 : vector<8x8xf32> to vector<1x8x8xf32>
    %34 = arith.truncf %33 : vector<1x8x8xf32> to vector<1x8x8xbf16>
    %35 = vector.extract_strided_slice %25 {offsets = [0, 0], sizes = [8, 8], strides = [1, 1]} : vector<8x32xf32> to vector<8x8xf32>
    %36 = vector.shape_cast %35 : vector<8x8xf32> to vector<1x8x8xf32>
    %37 = arith.truncf %36 : vector<1x8x8xf32> to vector<1x8x8xbf16>
    "tpu.trace_start"() <{level = 10 : i32, message = "bqd,bkd->bqk"}> : () -> ()
    %cst_25 = arith.constant dense<0.000000e+00> : vector<1x8x8xf32>
    %38 = tpu.matmul %31, %34, %cst_25 {dimension_numbers = #tpu.dot_dimension_numbers<[2], [2], [1], [1], [0, 0, 0, 1, 1, 1], [0], [0]>} : vector<1x8x8xbf16>, vector<1x8x8xbf16>, vector<1x8x8xf32> -> vector<1x8x8xf32>
    "tpu.trace_stop"() : () -> ()
    %cst_26 = arith.constant 0.353553385 : f32
    %39 = vector.broadcast %cst_26 : f32 to vector<1x8x8xf32>
    %40 = arith.mulf %38, %39 : vector<1x8x8xf32>
    %41 = arith.addf %40, %28 : vector<1x8x8xf32>
    %cst_27 = arith.constant dense<0xFF800000> : vector<1x8xf32>
    %42 = vector.multi_reduction <maximumf>, %41, %cst_27 [2] : vector<1x8x8xf32> to vector<1x8xf32>
    %43 = vector.shape_cast %42 : vector<1x8xf32> to vector<1x8x1xf32>
    %44 = vector.broadcast %43 : vector<1x8x1xf32> to vector<1x8x8xf32>
    %45 = arith.subf %41, %44 : vector<1x8x8xf32>
    %46 = math.exp %45 : vector<1x8x8xf32>
    %cst_28 = arith.constant dense<0.000000e+00> : vector<1x8xf32>
    %47 = vector.multi_reduction <add>, %46, %cst_28 [2] : vector<1x8x8xf32> to vector<1x8xf32>
    %48 = vector.shape_cast %47 : vector<1x8xf32> to vector<1x8x1xf32>
    %49 = arith.truncf %46 : vector<1x8x8xf32> to vector<1x8x8xbf16>
    "tpu.trace_start"() <{level = 10 : i32, message = "bqk,bkd->bqd"}> : () -> ()
    %cst_29 = arith.constant dense<0.000000e+00> : vector<1x8x8xf32>
    %50 = tpu.matmul %49, %37, %cst_29 {dimension_numbers = #tpu.dot_dimension_numbers<[2], [1], [1], [2], [0, 0, 0, 1, 1, 2], [0], [0]>} : vector<1x8x8xbf16>, vector<1x8x8xbf16>, vector<1x8x8xf32> -> vector<1x8x8xf32>
    "tpu.trace_stop"() : () -> ()
    %51 = tpu.reciprocal %48 {approx = true} : vector<1x8x1xf32> -> vector<1x8x1xf32>
    %52 = vector.broadcast %51 : vector<1x8x1xf32> to vector<1x8x8xf32>
    %53 = arith.mulf %50, %52 : vector<1x8x8xf32>
    %54 = vector.shape_cast %53 : vector<1x8x8xf32> to vector<8x8xf32>
    %c0_30 = arith.constant 0 : index
    %c0_31 = arith.constant 0 : index
    %55 = vector.load %arg26[%c0_30, %c0_31] : memref<8x32xf32, #tpu.memory_space<vmem>>, vector<8x8xf32>
    tpu.vector_store %arg26[%c0_30, %c0_31], %54 {strides = array<i32>} : memref<8x32xf32, #tpu.memory_space<vmem>>, vector<8x8xf32>,
    %56 = vector.extract_strided_slice %11 {offsets = [0, 8], sizes = [8, 8], strides = [1, 1]} : vector<8x32xf32> to vector<8x8xf32>
    %57 = vector.shape_cast %56 : vector<8x8xf32> to vector<1x8x8xf32>
    %58 = arith.truncf %57 : vector<1x8x8xf32> to vector<1x8x8xbf16>
    %59 = vector.extract_strided_slice %18 {offsets = [0, 8], sizes = [8, 8], strides = [1, 1]} : vector<8x32xf32> to vector<8x8xf32>
    %60 = vector.shape_cast %59 : vector<8x8xf32> to vector<1x8x8xf32>
    %61 = arith.truncf %60 : vector<1x8x8xf32> to vector<1x8x8xbf16>
    %62 = vector.extract_strided_slice %25 {offsets = [0, 8], sizes = [8, 8], strides = [1, 1]} : vector<8x32xf32> to vector<8x8xf32>
    %63 = vector.shape_cast %62 : vector<8x8xf32> to vector<1x8x8xf32>
    %64 = arith.truncf %63 : vector<1x8x8xf32> to vector<1x8x8xbf16>
    "tpu.trace_start"() <{level = 10 : i32, message = "bqd,bkd->bqk"}> : () -> ()
    %cst_32 = arith.constant dense<0.000000e+00> : vector<1x8x8xf32>
    %65 = tpu.matmul %58, %61, %cst_32 {dimension_numbers = #tpu.dot_dimension_numbers<[2], [2], [1], [1], [0, 0, 0, 1, 1, 1], [0], [0]>} : vector<1x8x8xbf16>, vector<1x8x8xbf16>, vector<1x8x8xf32> -> vector<1x8x8xf32>
    "tpu.trace_stop"() : () -> ()
    %cst_33 = arith.constant 0.353553385 : f32
    %66 = vector.broadcast %cst_33 : f32 to vector<1x8x8xf32>
    %67 = arith.mulf %65, %66 : vector<1x8x8xf32>
    %68 = arith.addf %67, %28 : vector<1x8x8xf32>
    %cst_34 = arith.constant dense<0xFF800000> : vector<1x8xf32>
    %69 = vector.multi_reduction <maximumf>, %68, %cst_34 [2] : vector<1x8x8xf32> to vector<1x8xf32>
    %70 = vector.shape_cast %69 : vector<1x8xf32> to vector<1x8x1xf32>
    %71 = vector.broadcast %70 : vector<1x8x1xf32> to vector<1x8x8xf32>
    %72 = arith.subf %68, %71 : vector<1x8x8xf32>
    %73 = math.exp %72 : vector<1x8x8xf32>
    %cst_35 = arith.constant dense<0.000000e+00> : vector<1x8xf32>
    %74 = vector.multi_reduction <add>, %73, %cst_35 [2] : vector<1x8x8xf32> to vector<1x8xf32>
    %75 = vector.shape_cast %74 : vector<1x8xf32> to vector<1x8x1xf32>
    %76 = arith.truncf %73 : vector<1x8x8xf32> to vector<1x8x8xbf16>
    "tpu.trace_start"() <{level = 10 : i32, message = "bqk,bkd->bqd"}> : () -> ()
    %cst_36 = arith.constant dense<0.000000e+00> : vector<1x8x8xf32>
    %77 = tpu.matmul %76, %64, %cst_36 {dimension_numbers = #tpu.dot_dimension_numbers<[2], [1], [1], [2], [0, 0, 0, 1, 1, 2], [0], [0]>} : vector<1x8x8xbf16>, vector<1x8x8xbf16>, vector<1x8x8xf32> -> vector<1x8x8xf32>
    "tpu.trace_stop"() : () -> ()
    %78 = tpu.reciprocal %75 {approx = true} : vector<1x8x1xf32> -> vector<1x8x1xf32>
    %79 = vector.broadcast %78 : vector<1x8x1xf32> to vector<1x8x8xf32>
    %80 = arith.mulf %77, %79 : vector<1x8x8xf32>
    %81 = vector.shape_cast %80 : vector<1x8x8xf32> to vector<8x8xf32>
    %c0_37 = arith.constant 0 : index
    %c8 = arith.constant 8 : index
    %82 = vector.load %arg26[%c0_37, %c8] : memref<8x32xf32, #tpu.memory_space<vmem>>, vector<8x8xf32>
    tpu.vector_store %arg26[%c0_37, %c8], %81 {strides = array<i32>} : memref<8x32xf32, #tpu.memory_space<vmem>>, vector<8x8xf32>,
    %83 = vector.extract_strided_slice %11 {offsets = [0, 16], sizes = [8, 8], strides = [1, 1]} : vector<8x32xf32> to vector<8x8xf32>
    %84 = vector.shape_cast %83 : vector<8x8xf32> to vector<1x8x8xf32>
    %85 = arith.truncf %84 : vector<1x8x8xf32> to vector<1x8x8xbf16>
    %86 = vector.extract_strided_slice %18 {offsets = [0, 16], sizes = [8, 8], strides = [1, 1]} : vector<8x32xf32> to vector<8x8xf32>
    %87 = vector.shape_cast %86 : vector<8x8xf32> to vector<1x8x8xf32>
    %88 = arith.truncf %87 : vector<1x8x8xf32> to vector<1x8x8xbf16>
    %89 = vector.extract_strided_slice %25 {offsets = [0, 16], sizes = [8, 8], strides = [1, 1]} : vector<8x32xf32> to vector<8x8xf32>
    %90 = vector.shape_cast %89 : vector<8x8xf32> to vector<1x8x8xf32>
    %91 = arith.truncf %90 : vector<1x8x8xf32> to vector<1x8x8xbf16>
    "tpu.trace_start"() <{level = 10 : i32, message = "bqd,bkd->bqk"}> : () -> ()
    %cst_38 = arith.constant dense<0.000000e+00> : vector<1x8x8xf32>
    %92 = tpu.matmul %85, %88, %cst_38 {dimension_numbers = #tpu.dot_dimension_numbers<[2], [2], [1], [1], [0, 0, 0, 1, 1, 1], [0], [0]>} : vector<1x8x8xbf16>, vector<1x8x8xbf16>, vector<1x8x8xf32> -> vector<1x8x8xf32>
    "tpu.trace_stop"() : () -> ()
    %cst_39 = arith.constant 0.353553385 : f32
    %93 = vector.broadcast %cst_39 : f32 to vector<1x8x8xf32>
    %94 = arith.mulf %92, %93 : vector<1x8x8xf32>
    %95 = arith.addf %94, %28 : vector<1x8x8xf32>
    %cst_40 = arith.constant dense<0xFF800000> : vector<1x8xf32>
    %96 = vector.multi_reduction <maximumf>, %95, %cst_40 [2] : vector<1x8x8xf32> to vector<1x8xf32>
    %97 = vector.shape_cast %96 : vector<1x8xf32> to vector<1x8x1xf32>
    %98 = vector.broadcast %97 : vector<1x8x1xf32> to vector<1x8x8xf32>
    %99 = arith.subf %95, %98 : vector<1x8x8xf32>
    %100 = math.exp %99 : vector<1x8x8xf32>
    %cst_41 = arith.constant dense<0.000000e+00> : vector<1x8xf32>
    %101 = vector.multi_reduction <add>, %100, %cst_41 [2] : vector<1x8x8xf32> to vector<1x8xf32>
    %102 = vector.shape_cast %101 : vector<1x8xf32> to vector<1x8x1xf32>
    %103 = arith.truncf %100 : vector<1x8x8xf32> to vector<1x8x8xbf16>
    "tpu.trace_start"() <{level = 10 : i32, message = "bqk,bkd->bqd"}> : () -> ()
    %cst_42 = arith.constant dense<0.000000e+00> : vector<1x8x8xf32>
    %104 = tpu.matmul %103, %91, %cst_42 {dimension_numbers = #tpu.dot_dimension_numbers<[2], [1], [1], [2], [0, 0, 0, 1, 1, 2], [0], [0]>} : vector<1x8x8xbf16>, vector<1x8x8xbf16>, vector<1x8x8xf32> -> vector<1x8x8xf32>
    "tpu.trace_stop"() : () -> ()
    %105 = tpu.reciprocal %102 {approx = true} : vector<1x8x1xf32> -> vector<1x8x1xf32>
    %106 = vector.broadcast %105 : vector<1x8x1xf32> to vector<1x8x8xf32>
    %107 = arith.mulf %104, %106 : vector<1x8x8xf32>
    %108 = vector.shape_cast %107 : vector<1x8x8xf32> to vector<8x8xf32>
    %c0_43 = arith.constant 0 : index
    %c16 = arith.constant 16 : index
    %109 = vector.load %arg26[%c0_43, %c16] : memref<8x32xf32, #tpu.memory_space<vmem>>, vector<8x8xf32>
    tpu.vector_store %arg26[%c0_43, %c16], %108 {strides = array<i32>} : memref<8x32xf32, #tpu.memory_space<vmem>>, vector<8x8xf32>,
    %110 = vector.extract_strided_slice %11 {offsets = [0, 24], sizes = [8, 8], strides = [1, 1]} : vector<8x32xf32> to vector<8x8xf32>
    %111 = vector.shape_cast %110 : vector<8x8xf32> to vector<1x8x8xf32>
    %112 = arith.truncf %111 : vector<1x8x8xf32> to vector<1x8x8xbf16>
    %113 = vector.extract_strided_slice %18 {offsets = [0, 24], sizes = [8, 8], strides = [1, 1]} : vector<8x32xf32> to vector<8x8xf32>
    %114 = vector.shape_cast %113 : vector<8x8xf32> to vector<1x8x8xf32>
    %115 = arith.truncf %114 : vector<1x8x8xf32> to vector<1x8x8xbf16>
    %116 = vector.extract_strided_slice %25 {offsets = [0, 24], sizes = [8, 8], strides = [1, 1]} : vector<8x32xf32> to vector<8x8xf32>
    %117 = vector.shape_cast %116 : vector<8x8xf32> to vector<1x8x8xf32>
    %118 = arith.truncf %117 : vector<1x8x8xf32> to vector<1x8x8xbf16>
    "tpu.trace_start"() <{level = 10 : i32, message = "bqd,bkd->bqk"}> : () -> ()
    %cst_44 = arith.constant dense<0.000000e+00> : vector<1x8x8xf32>
    %119 = tpu.matmul %112, %115, %cst_44 {dimension_numbers = #tpu.dot_dimension_numbers<[2], [2], [1], [1], [0, 0, 0, 1, 1, 1], [0], [0]>} : vector<1x8x8xbf16>, vector<1x8x8xbf16>, vector<1x8x8xf32> -> vector<1x8x8xf32>
    "tpu.trace_stop"() : () -> ()
    %cst_45 = arith.constant 0.353553385 : f32
    %120 = vector.broadcast %cst_45 : f32 to vector<1x8x8xf32>
    %121 = arith.mulf %119, %120 : vector<1x8x8xf32>
    %122 = arith.addf %121, %28 : vector<1x8x8xf32>
    %cst_46 = arith.constant dense<0xFF800000> : vector<1x8xf32>
    %123 = vector.multi_reduction <maximumf>, %122, %cst_46 [2] : vector<1x8x8xf32> to vector<1x8xf32>
    %124 = vector.shape_cast %123 : vector<1x8xf32> to vector<1x8x1xf32>
    %125 = vector.broadcast %124 : vector<1x8x1xf32> to vector<1x8x8xf32>
    %126 = arith.subf %122, %125 : vector<1x8x8xf32>
    %127 = math.exp %126 : vector<1x8x8xf32>
    %cst_47 = arith.constant dense<0.000000e+00> : vector<1x8xf32>
    %128 = vector.multi_reduction <add>, %127, %cst_47 [2] : vector<1x8x8xf32> to vector<1x8xf32>
    %129 = vector.shape_cast %128 : vector<1x8xf32> to vector<1x8x1xf32>
    %130 = arith.truncf %127 : vector<1x8x8xf32> to vector<1x8x8xbf16>
    "tpu.trace_start"() <{level = 10 : i32, message = "bqk,bkd->bqd"}> : () -> ()
    %cst_48 = arith.constant dense<0.000000e+00> : vector<1x8x8xf32>
    %131 = tpu.matmul %130, %118, %cst_48 {dimension_numbers = #tpu.dot_dimension_numbers<[2], [1], [1], [2], [0, 0, 0, 1, 1, 2], [0], [0]>} : vector<1x8x8xbf16>, vector<1x8x8xbf16>, vector<1x8x8xf32> -> vector<1x8x8xf32>
    "tpu.trace_stop"() : () -> ()
    %132 = tpu.reciprocal %129 {approx = true} : vector<1x8x1xf32> -> vector<1x8x1xf32>
    %133 = vector.broadcast %132 : vector<1x8x1xf32> to vector<1x8x8xf32>
    %134 = arith.mulf %131, %133 : vector<1x8x8xf32>
    %135 = vector.shape_cast %134 : vector<1x8x8xf32> to vector<8x8xf32>
    %c0_49 = arith.constant 0 : index
    %c24 = arith.constant 24 : index
    %136 = vector.load %arg26[%c0_49, %c24] : memref<8x32xf32, #tpu.memory_space<vmem>>, vector<8x8xf32>
    tpu.vector_store %arg26[%c0_49, %c24], %135 {strides = array<i32>} : memref<8x32xf32, #tpu.memory_space<vmem>>, vector<8x8xf32>,
    %c0_50 = arith.constant 0 : index
    %c0_51 = arith.constant 0 : index
    %137 = vector.load %arg26[%c0_50, %c0_51] : memref<8x32xf32, #tpu.memory_space<vmem>>, vector<8x32xf32>
    %138 = arith.truncf %137 : vector<8x32xf32> to vector<8x32xbf16>
    %c0_52 = arith.constant 0 : index
    %c0_53 = arith.constant 0 : index
    %c0_54 = arith.constant 0 : index
    %139 = vector.load %arg10[%c0_52, %c0_53, %c0_54] : memref<1x32x32xbf16, #tpu.memory_space<vmem>>, vector<1x32x32xbf16>
    %140 = vector.shape_cast %139 : vector<1x32x32xbf16> to vector<32x32xbf16>
    %cst_55 = arith.constant dense<0.000000e+00> : vector<8x32xf32>
    %141 = tpu.matmul %138, %140, %cst_55 {dimension_numbers = #tpu.dot_dimension_numbers<[1], [0], [0], [1], [0, 0, 1, 1], [], []>} : vector<8x32xbf16>, vector<32x32xbf16>, vector<8x32xf32> -> vector<8x32xf32>
    %c0_56 = arith.constant 0 : index
    %c0_57 = arith.constant 0 : index
    %c0_58 = arith.constant 0 : index
    %142 = vector.load %arg11[%c0_56, %c0_57, %c0_58] : memref<1x1x32xf32, #tpu.memory_space<vmem>>, vector<1x1x32xf32>
    %143 = vector.shape_cast %142 : vector<1x1x32xf32> to vector<1x32xf32>
    %144 = vector.broadcast %143 : vector<1x32xf32> to vector<8x32xf32>
    %145 = arith.addf %141, %144 : vector<8x32xf32>
    %146 = arith.addf %3, %145 : vector<8x32xf32>
    %c0_59 = arith.constant 0 : index
    %c0_60 = arith.constant 0 : index
    %c0_61 = arith.constant 0 : index
    %147 = vector.load %arg12[%c0_59, %c0_60, %c0_61] : memref<1x1x32xf32, #tpu.memory_space<vmem>>, vector<1x1x32xf32>
    %148 = vector.shape_cast %147 : vector<1x1x32xf32> to vector<1x32xf32>
    %c0_62 = arith.constant 0 : index
    %c0_63 = arith.constant 0 : index
    %c0_64 = arith.constant 0 : index
    %149 = vector.load %arg13[%c0_62, %c0_63, %c0_64] : memref<1x1x32xf32, #tpu.memory_space<vmem>>, vector<1x1x32xf32>
    %150 = vector.shape_cast %149 : vector<1x1x32xf32> to vector<1x32xf32>
    %cst_65 = arith.constant dense<0.000000e+00> : vector<8xf32>
    %151 = vector.multi_reduction <add>, %146, %cst_65 [1] : vector<8x32xf32> to vector<8xf32>
    %152 = vector.shape_cast %151 : vector<8xf32> to vector<8x1xf32>
    %cst_66 = arith.constant 3.200000e+01 : f32
    %153 = vector.broadcast %cst_66 : f32 to vector<8x1xf32>
    %154 = arith.divf %152, %153 : vector<8x1xf32>
    %155 = arith.mulf %146, %146 : vector<8x32xf32>
    %cst_67 = arith.constant dense<0.000000e+00> : vector<8xf32>
    %156 = vector.multi_reduction <add>, %155, %cst_67 [1] : vector<8x32xf32> to vector<8xf32>
    %157 = vector.shape_cast %156 : vector<8xf32> to vector<8x1xf32>
    %cst_68 = arith.constant 3.200000e+01 : f32
    %158 = vector.broadcast %cst_68 : f32 to vector<8x1xf32>
    %159 = arith.divf %157, %158 : vector<8x1xf32>
    %160 = arith.mulf %154, %154 : vector<8x1xf32>
    %161 = arith.subf %159, %160 : vector<8x1xf32>
    %162 = vector.broadcast %154 : vector<8x1xf32> to vector<8x32xf32>
    %163 = arith.subf %146, %162 : vector<8x32xf32>
    %cst_69 = arith.constant 9.99999974E-6 : f32
    %164 = vector.broadcast %cst_69 : f32 to vector<8x1xf32>
    %165 = arith.addf %161, %164 : vector<8x1xf32>
    %166 = math.rsqrt %165 : vector<8x1xf32>
    %167 = vector.broadcast %166 : vector<8x1xf32> to vector<8x32xf32>
    %168 = arith.mulf %163, %167 : vector<8x32xf32>
    %169 = vector.broadcast %148 : vector<1x32xf32> to vector<8x32xf32>
    %170 = arith.mulf %168, %169 : vector<8x32xf32>
    %171 = vector.broadcast %150 : vector<1x32xf32> to vector<8x32xf32>
    %172 = arith.addf %170, %171 : vector<8x32xf32>
    %173 = arith.truncf %172 : vector<8x32xf32> to vector<8x32xbf16>
    %c0_70 = arith.constant 0 : index
    %c0_71 = arith.constant 0 : index
    %c0_72 = arith.constant 0 : index
    %174 = vector.load %arg16[%c0_70, %c0_71, %c0_72] : memref<1x32x64xbf16, #tpu.memory_space<vmem>>, vector<1x32x64xbf16>
    %175 = vector.shape_cast %174 : vector<1x32x64xbf16> to vector<32x64xbf16>
    %cst_73 = arith.constant dense<0.000000e+00> : vector<8x64xf32>
    %176 = tpu.matmul %173, %175, %cst_73 {dimension_numbers = #tpu.dot_dimension_numbers<[1], [0], [0], [1], [0, 0, 1, 1], [], []>} : vector<8x32xbf16>, vector<32x64xbf16>, vector<8x64xf32> -> vector<8x64xf32>
    %c0_74 = arith.constant 0 : index
    %c0_75 = arith.constant 0 : index
    %c0_76 = arith.constant 0 : index
    %177 = vector.load %arg17[%c0_74, %c0_75, %c0_76] : memref<1x1x64xf32, #tpu.memory_space<vmem>>, vector<1x1x64xf32>
    %178 = vector.shape_cast %177 : vector<1x1x64xf32> to vector<1x64xf32>
    %179 = vector.broadcast %178 : vector<1x64xf32> to vector<8x64xf32>
    %180 = arith.addf %176, %179 : vector<8x64xf32>
    %cst_77 = arith.constant 0.000000e+00 : f32
    %181 = vector.broadcast %cst_77 : f32 to vector<8x64xf32>
    %182 = arith.maximumf %180, %181 : vector<8x64xf32>
    %183 = arith.truncf %182 : vector<8x64xf32> to vector<8x64xbf16>
    %c0_78 = arith.constant 0 : index
    %c0_79 = arith.constant 0 : index
    %c0_80 = arith.constant 0 : index
    %184 = vector.load %arg18[%c0_78, %c0_79, %c0_80] : memref<1x64x32xbf16, #tpu.memory_space<vmem>>, vector<1x64x32xbf16>
    %185 = vector.shape_cast %184 : vector<1x64x32xbf16> to vector<64x32xbf16>
    %cst_81 = arith.constant dense<0.000000e+00> : vector<8x32xf32>
    %186 = tpu.matmul %183, %185, %cst_81 {dimension_numbers = #tpu.dot_dimension_numbers<[1], [0], [0], [1], [0, 0, 1, 1], [], []>} : vector<8x64xbf16>, vector<64x32xbf16>, vector<8x32xf32> -> vector<8x32xf32>
    %c0_82 = arith.constant 0 : index
    %c0_83 = arith.constant 0 : index
    %c0_84 = arith.constant 0 : index
    %187 = vector.load %arg19[%c0_82, %c0_83, %c0_84] : memref<1x1x32xf32, #tpu.memory_space<vmem>>, vector<1x1x32xf32>
    %188 = vector.shape_cast %187 : vector<1x1x32xf32> to vector<1x32xf32>
    %189 = vector.broadcast %188 : vector<1x32xf32> to vector<8x32xf32>
    %190 = arith.addf %186, %189 : vector<8x32xf32>
    %191 = arith.addf %172, %190 : vector<8x32xf32>
    %c0_85 = arith.constant 0 : index
    %c0_86 = arith.constant 0 : index
    %c0_87 = arith.constant 0 : index
    %192 = vector.load %arg14[%c0_85, %c0_86, %c0_87] : memref<1x1x32xf32, #tpu.memory_space<vmem>>, vector<1x1x32xf32>
    %193 = vector.shape_cast %192 : vector<1x1x32xf32> to vector<1x32xf32>
    %c0_88 = arith.constant 0 : index
    %c0_89 = arith.constant 0 : index
    %c0_90 = arith.constant 0 : index
    %194 = vector.load %arg15[%c0_88, %c0_89, %c0_90] : memref<1x1x32xf32, #tpu.memory_space<vmem>>, vector<1x1x32xf32>
    %195 = vector.shape_cast %194 : vector<1x1x32xf32> to vector<1x32xf32>
    %cst_91 = arith.constant dense<0.000000e+00> : vector<8xf32>
    %196 = vector.multi_reduction <add>, %191, %cst_91 [1] : vector<8x32xf32> to vector<8xf32>
    %197 = vector.shape_cast %196 : vector<8xf32> to vector<8x1xf32>
    %cst_92 = arith.constant 3.200000e+01 : f32
    %198 = vector.broadcast %cst_92 : f32 to vector<8x1xf32>
    %199 = arith.divf %197, %198 : vector<8x1xf32>
    %200 = arith.mulf %191, %191 : vector<8x32xf32>
    %cst_93 = arith.constant dense<0.000000e+00> : vector<8xf32>
    %201 = vector.multi_reduction <add>, %200, %cst_93 [1] : vector<8x32xf32> to vector<8xf32>
    %202 = vector.shape_cast %201 : vector<8xf32> to vector<8x1xf32>
    %cst_94 = arith.constant 3.200000e+01 : f32
    %203 = vector.broadcast %cst_94 : f32 to vector<8x1xf32>
    %204 = arith.divf %202, %203 : vector<8x1xf32>
    %205 = arith.mulf %199, %199 : vector<8x1xf32>
    %206 = arith.subf %204, %205 : vector<8x1xf32>
    %207 = vector.broadcast %199 : vector<8x1xf32> to vector<8x32xf32>
    %208 = arith.subf %191, %207 : vector<8x32xf32>
    %cst_95 = arith.constant 9.99999974E-6 : f32
    %209 = vector.broadcast %cst_95 : f32 to vector<8x1xf32>
    %210 = arith.addf %206, %209 : vector<8x1xf32>
    %211 = math.rsqrt %210 : vector<8x1xf32>
    %212 = vector.broadcast %211 : vector<8x1xf32> to vector<8x32xf32>
    %213 = arith.mulf %208, %212 : vector<8x32xf32>
    %214 = vector.broadcast %193 : vector<1x32xf32> to vector<8x32xf32>
    %215 = arith.mulf %213, %214 : vector<8x32xf32>
    %216 = vector.broadcast %195 : vector<1x32xf32> to vector<8x32xf32>
    %217 = arith.addf %215, %216 : vector<8x32xf32>
    %c0_96 = arith.constant 0 : index
    %c0_97 = arith.constant 0 : index
    %218 = vector.load %arg25[%c0_96, %c0_97] : memref<8x32xf32, #tpu.memory_space<vmem>>, vector<8x32xf32>
    tpu.vector_store %arg25[%c0_96, %c0_97], %217 {strides = array<i32>} : memref<8x32xf32, #tpu.memory_space<vmem>>, vector<8x32xf32>,
    %c1_i32 = arith.constant 1 : i32
    %219 = arith.cmpi eq, %arg1, %c1_i32 : i32
    %220 = arith.extui %219 : i1 to i32
    %c0_i32_98 = arith.constant 0 : i32
    %221 = arith.cmpi ne, %220, %c0_i32_98 : i32
    scf.if %221 {
      %c0_99 = arith.constant 0 : index
      %c0_100 = arith.constant 0 : index
      %222 = vector.load %arg20[%c0_99, %c0_100] : memref<1x32xf32, #tpu.memory_space<vmem>>, vector<1x32xf32>
      %c0_101 = arith.constant 0 : index
      %c0_102 = arith.constant 0 : index
      %223 = vector.load %arg21[%c0_101, %c0_102] : memref<1x32xf32, #tpu.memory_space<vmem>>, vector<1x32xf32>
      %cst_103 = arith.constant dense<0.000000e+00> : vector<8xf32>
      %224 = vector.multi_reduction <add>, %217, %cst_103 [1] : vector<8x32xf32> to vector<8xf32>
      %225 = vector.shape_cast %224 : vector<8xf32> to vector<8x1xf32>
      %cst_104 = arith.constant 3.200000e+01 : f32
      %226 = vector.broadcast %cst_104 : f32 to vector<8x1xf32>
      %227 = arith.divf %225, %226 : vector<8x1xf32>
      %228 = arith.mulf %217, %217 : vector<8x32xf32>
      %cst_105 = arith.constant dense<0.000000e+00> : vector<8xf32>
      %229 = vector.multi_reduction <add>, %228, %cst_105 [1] : vector<8x32xf32> to vector<8xf32>
      %230 = vector.shape_cast %229 : vector<8xf32> to vector<8x1xf32>
      %cst_106 = arith.constant 3.200000e+01 : f32
      %231 = vector.broadcast %cst_106 : f32 to vector<8x1xf32>
      %232 = arith.divf %230, %231 : vector<8x1xf32>
      %233 = arith.mulf %227, %227 : vector<8x1xf32>
      %234 = arith.subf %232, %233 : vector<8x1xf32>
      %235 = vector.broadcast %227 : vector<8x1xf32> to vector<8x32xf32>
      %236 = arith.subf %217, %235 : vector<8x32xf32>
      %cst_107 = arith.constant 9.99999974E-6 : f32
      %237 = vector.broadcast %cst_107 : f32 to vector<8x1xf32>
      %238 = arith.addf %234, %237 : vector<8x1xf32>
      %239 = math.rsqrt %238 : vector<8x1xf32>
      %240 = vector.broadcast %239 : vector<8x1xf32> to vector<8x32xf32>
      %241 = arith.mulf %236, %240 : vector<8x32xf32>
      %242 = vector.broadcast %222 : vector<1x32xf32> to vector<8x32xf32>
      %243 = arith.mulf %241, %242 : vector<8x32xf32>
      %244 = vector.broadcast %223 : vector<1x32xf32> to vector<8x32xf32>
      %245 = arith.addf %243, %244 : vector<8x32xf32>
      %246 = arith.truncf %245 : vector<8x32xf32> to vector<8x32xbf16>
      %c0_108 = arith.constant 0 : index
      %c0_109 = arith.constant 0 : index
      %247 = vector.load %arg22[%c0_108, %c0_109] : memref<32x128xbf16, #tpu.memory_space<vmem>>, vector<32x128xbf16>
      %cst_110 = arith.constant dense<0.000000e+00> : vector<8x128xf32>
      %248 = tpu.matmul %246, %247, %cst_110 {dimension_numbers = #tpu.dot_dimension_numbers<[1], [0], [0], [1], [0, 0, 1, 1], [], []>} : vector<8x32xbf16>, vector<32x128xbf16>, vector<8x128xf32> -> vector<8x128xf32>
      %c0_111 = arith.constant 0 : index
      %c0_112 = arith.constant 0 : index
      %249 = vector.load %arg23[%c0_111, %c0_112] : memref<1x128xf32, #tpu.memory_space<vmem>>, vector<1x128xf32>
      %250 = vector.broadcast %249 : vector<1x128xf32> to vector<8x128xf32>
      %251 = arith.addf %248, %250 : vector<8x128xf32>
      %252 = vector.shape_cast %251 : vector<8x128xf32> to vector<1x8x128xf32>
      %c0_113 = arith.constant 0 : index
      %c0_114 = arith.constant 0 : index
      %c0_115 = arith.constant 0 : index
      %253 = vector.load %arg24[%c0_113, %c0_114, %c0_115] : memref<1x8x128xf32, #tpu.memory_space<vmem>>, vector<1x8x128xf32>
      tpu.vector_store %arg24[%c0_113, %c0_114, %c0_115], %252 {strides = array<i32>} : memref<1x8x128xf32, #tpu.memory_space<vmem>>, vector<1x8x128xf32>,
    } else {
    }
    return
  }
  func.func @transform_0(%arg0: i32, %arg1: i32) -> (i32, i32, i32) {
    %c0_i32 = arith.constant 0 : i32
    %c0_i32_0 = arith.constant 0 : i32
    %c0_i32_1 = arith.constant 0 : i32
    return %arg0, %c0_i32, %c0_i32_0 : i32, i32, i32
  }
  func.func @transform_1(%arg0: i32, %arg1: i32) -> (i32, i32, i32) {
    %c0_i32 = arith.constant 0 : i32
    %c0_i32_0 = arith.constant 0 : i32
    %c0_i32_1 = arith.constant 0 : i32
    return %arg0, %c0_i32, %c0_i32_0 : i32, i32, i32
  }
  func.func @transform_2(%arg0: i32, %arg1: i32) -> (i32, i32, i32) {
    %c0_i32 = arith.constant 0 : i32
    %c0_i32_0 = arith.constant 0 : i32
    %c0_i32_1 = arith.constant 0 : i32
    return %arg1, %c0_i32, %c0_i32_0 : i32, i32, i32
  }
  func.func @transform_3(%arg0: i32, %arg1: i32) -> (i32, i32, i32) {
    %c0_i32 = arith.constant 0 : i32
    %c0_i32_0 = arith.constant 0 : i32
    %c0_i32_1 = arith.constant 0 : i32
    return %arg1, %c0_i32, %c0_i32_0 : i32, i32, i32
  }
  func.func @transform_4(%arg0: i32, %arg1: i32) -> (i32, i32, i32) {
    %c0_i32 = arith.constant 0 : i32
    %c0_i32_0 = arith.constant 0 : i32
    %c0_i32_1 = arith.constant 0 : i32
    return %arg1, %c0_i32, %c0_i32_0 : i32, i32, i32
  }
  func.func @transform_5(%arg0: i32, %arg1: i32) -> (i32, i32, i32) {
    %c0_i32 = arith.constant 0 : i32
    %c0_i32_0 = arith.constant 0 : i32
    %c0_i32_1 = arith.constant 0 : i32
    return %arg1, %c0_i32, %c0_i32_0 : i32, i32, i32
  }
  func.func @transform_6(%arg0: i32, %arg1: i32) -> (i32, i32, i32) {
    %c0_i32 = arith.constant 0 : i32
    %c0_i32_0 = arith.constant 0 : i32
    %c0_i32_1 = arith.constant 0 : i32
    return %arg1, %c0_i32, %c0_i32_0 : i32, i32, i32
  }
  func.func @transform_7(%arg0: i32, %arg1: i32) -> (i32, i32, i32) {
    %c0_i32 = arith.constant 0 : i32
    %c0_i32_0 = arith.constant 0 : i32
    %c0_i32_1 = arith.constant 0 : i32
    return %arg1, %c0_i32, %c0_i32_0 : i32, i32, i32
  }
  func.func @transform_8(%arg0: i32, %arg1: i32) -> (i32, i32, i32) {
    %c0_i32 = arith.constant 0 : i32
    %c0_i32_0 = arith.constant 0 : i32
    %c0_i32_1 = arith.constant 0 : i32
    return %arg1, %c0_i32, %c0_i32_0 : i32, i32, i32
  }
  func.func @transform_9(%arg0: i32, %arg1: i32) -> (i32, i32, i32) {
    %c0_i32 = arith.constant 0 : i32
    %c0_i32_0 = arith.constant 0 : i32
    %c0_i32_1 = arith.constant 0 : i32
    return %arg1, %c0_i32, %c0_i32_0 : i32, i32, i32
  }
  func.func @transform_10(%arg0: i32, %arg1: i32) -> (i32, i32, i32) {
    %c0_i32 = arith.constant 0 : i32
    %c0_i32_0 = arith.constant 0 : i32
    %c0_i32_1 = arith.constant 0 : i32
    return %arg1, %c0_i32, %c0_i32_0 : i32, i32, i32
  }
  func.func @transform_11(%arg0: i32, %arg1: i32) -> (i32, i32, i32) {
    %c0_i32 = arith.constant 0 : i32
    %c0_i32_0 = arith.constant 0 : i32
    %c0_i32_1 = arith.constant 0 : i32
    return %arg1, %c0_i32, %c0_i32_0 : i32, i32, i32
  }
  func.func @transform_12(%arg0: i32, %arg1: i32) -> (i32, i32, i32) {
    %c0_i32 = arith.constant 0 : i32
    %c0_i32_0 = arith.constant 0 : i32
    %c0_i32_1 = arith.constant 0 : i32
    return %arg1, %c0_i32, %c0_i32_0 : i32, i32, i32
  }
  func.func @transform_13(%arg0: i32, %arg1: i32) -> (i32, i32, i32) {
    %c0_i32 = arith.constant 0 : i32
    %c0_i32_0 = arith.constant 0 : i32
    %c0_i32_1 = arith.constant 0 : i32
    return %arg1, %c0_i32, %c0_i32_0 : i32, i32, i32
  }
  func.func @transform_14(%arg0: i32, %arg1: i32) -> (i32, i32, i32) {
    %c0_i32 = arith.constant 0 : i32
    %c0_i32_0 = arith.constant 0 : i32
    %c0_i32_1 = arith.constant 0 : i32
    return %arg1, %c0_i32, %c0_i32_0 : i32, i32, i32
  }
  func.func @transform_15(%arg0: i32, %arg1: i32) -> (i32, i32, i32) {
    %c0_i32 = arith.constant 0 : i32
    %c0_i32_0 = arith.constant 0 : i32
    %c0_i32_1 = arith.constant 0 : i32
    return %arg1, %c0_i32, %c0_i32_0 : i32, i32, i32
  }
  func.func @transform_16(%arg0: i32, %arg1: i32) -> (i32, i32, i32) {
    %c0_i32 = arith.constant 0 : i32
    %c0_i32_0 = arith.constant 0 : i32
    %c0_i32_1 = arith.constant 0 : i32
    return %arg1, %c0_i32, %c0_i32_0 : i32, i32, i32
  }
  func.func @transform_17(%arg0: i32, %arg1: i32) -> (i32, i32, i32) {
    %c0_i32 = arith.constant 0 : i32
    %c0_i32_0 = arith.constant 0 : i32
    %c0_i32_1 = arith.constant 0 : i32
    return %arg1, %c0_i32, %c0_i32_0 : i32, i32, i32
  }
  func.func @transform_18(%arg0: i32, %arg1: i32) -> (i32, i32) {
    %c0_i32 = arith.constant 0 : i32
    %c0_i32_0 = arith.constant 0 : i32
    %c0_i32_1 = arith.constant 0 : i32
    return %c0_i32, %c0_i32_0 : i32, i32
  }
  func.func @transform_19(%arg0: i32, %arg1: i32) -> (i32, i32) {
    %c0_i32 = arith.constant 0 : i32
    %c0_i32_0 = arith.constant 0 : i32
    %c0_i32_1 = arith.constant 0 : i32
    return %c0_i32, %c0_i32_0 : i32, i32
  }
  func.func @transform_20(%arg0: i32, %arg1: i32) -> (i32, i32) {
    %c0_i32 = arith.constant 0 : i32
    %c0_i32_0 = arith.constant 0 : i32
    %c0_i32_1 = arith.constant 0 : i32
    return %c0_i32, %c0_i32_0 : i32, i32
  }
  func.func @transform_21(%arg0: i32, %arg1: i32) -> (i32, i32) {
    %c0_i32 = arith.constant 0 : i32
    %c0_i32_0 = arith.constant 0 : i32
    %c0_i32_1 = arith.constant 0 : i32
    return %c0_i32, %c0_i32_0 : i32, i32
  }
  func.func @transform_22(%arg0: i32, %arg1: i32) -> (i32, i32, i32) {
    %c0_i32 = arith.constant 0 : i32
    %c0_i32_0 = arith.constant 0 : i32
    %c0_i32_1 = arith.constant 0 : i32
    return %arg0, %c0_i32, %c0_i32_0 : i32, i32, i32
  }
}

</mosaic_0001>

<llo_original>
// kernel: tpu_custom_call.1
$region0: #{tpu_custom_call.1}
  #allocation0 [shape = 'u32[]', space=smem, size = 0x4, offset = 0x4, fixed_abs, tag = 'smem constant byte address 0x4 - core index']
  #allocation1 [shape = 'u32[144,128]{1,0:T(1,128)}', space=vmem, size = 0x12000, scoped, tag = 'internal scratch']
  #allocation2 [shape = 'f32[8,32]{1,0:T(8,128)}', space=vmem, size = 0x1000, scoped, tag = 'scratch operand']
  #allocation3 [shape = 'f32[8,32]{1,0:T(8,128)}', space=vmem, size = 0x1000, scoped, tag = 'scratch operand']
  %s0 = inlined_call_operand.hbm [shape: f32[2,8,32], index: 0, kind: input, shape index: {}]
  %s1 = inlined_call_operand.hbm [shape: f32[2,1,8], index: 1, kind: input, shape index: {}]
  %s2 = inlined_call_operand.vmem [shape: bf16[2,32,32], index: 2, kind: input, shape index: {}]
  %s3 = inlined_call_operand.hbm [shape: f32[2,1,32], index: 3, kind: input, shape index: {}]
  %s4 = inlined_call_operand.vmem [shape: bf16[2,32,32], index: 4, kind: input, shape index: {}]
  %s5 = inlined_call_operand.hbm [shape: f32[2,1,32], index: 5, kind: input, shape index: {}]
  %s6 = inlined_call_operand.vmem [shape: bf16[2,32,32], index: 6, kind: input, shape index: {}]
  %s7 = inlined_call_operand.hbm [shape: f32[2,1,32], index: 7, kind: input, shape index: {}]
  %s8 = inlined_call_operand.hbm [shape: bf16[2,32,32], index: 8, kind: input, shape index: {}]
  %s9 = inlined_call_operand.hbm [shape: f32[2,1,32], index: 9, kind: input, shape index: {}]
  %s10 = inlined_call_operand.vmem [shape: f32[2,1,32], index: 10, kind: input, shape index: {}]
  %s11 = inlined_call_operand.vmem [shape: f32[2,1,32], index: 11, kind: input, shape index: {}]
  %s12 = inlined_call_operand.hbm [shape: f32[2,1,32], index: 12, kind: input, shape index: {}]
  %s13 = inlined_call_operand.vmem [shape: f32[2,1,32], index: 13, kind: input, shape index: {}]
  %s14 = inlined_call_operand.hbm [shape: bf16[2,32,64], index: 14, kind: input, shape index: {}]
  %s15 = inlined_call_operand.vmem [shape: f32[2,1,64], index: 15, kind: input, shape index: {}]
  %s16 = inlined_call_operand.vmem [shape: bf16[2,64,32], index: 16, kind: input, shape index: {}]
  %s17 = inlined_call_operand.vmem [shape: f32[2,1,32], index: 17, kind: input, shape index: {}]
  %s18 = inlined_call_operand.vmem [shape: f32[1,32], index: 18, kind: input, shape index: {}]
  %s19 = inlined_call_operand.vmem [shape: f32[1,32], index: 19, kind: input, shape index: {}]
  %s20 = inlined_call_operand.vmem [shape: bf16[32,128], index: 20, kind: input, shape index: {}]
  %s21 = inlined_call_operand.vmem [shape: f32[1,128], index: 21, kind: input, shape index: {}]
  %s22 = inlined_call_operand.hbm [shape: f32[2,8,128], index: 22, kind: output, shape index: {}]
  %s23 = sld [smem:[#allocation0]]
  $region165: #{tpu_custom_call.1} parent=0
    _
  %s25 = ssub.s32 1, %s23
  %s26 = scalar_select 0, %s25, %s23
  $region1: #{tpu_custom_call.1} parent=0
    #allocation4 [shape = 'u8[8192]{0}', space=vmem, size = 0x2000, scoped, tag = 'input window, operand 0']
    #allocation5 [shape = 's32[2]{0}', space=sflag, size = 0x8, scoped, tag = 'scoped memory for tpu_custom_call.1']
    #allocation6 [shape = 's32[2]{0}', space=sflag, size = 0x8, scoped, tag = 'scoped memory for tpu_custom_call.1']
    #allocation7 [shape = 'u8[1024]{0}', space=vmem, size = 0x400, scoped, tag = 'input window, operand 1']
    #allocation8 [shape = 's32[2]{0}', space=sflag, size = 0x8, scoped, tag = 'scoped memory for tpu_custom_call.1']
    #allocation9 [shape = 'u8[1024]{0}', space=vmem, size = 0x400, scoped, tag = 'input window, operand 3']
    #allocation10 [shape = 'u8[1024]{0}', space=vmem, size = 0x400, scoped, tag = 'input window, operand 5']
    #allocation11 [shape = 's32[2]{0}', space=sflag, size = 0x8, scoped, tag = 'scoped memory for tpu_custom_call.1']
    #allocation12 [shape = 'u8[1024]{0}', space=vmem, size = 0x400, scoped, tag = 'input window, operand 7']
    #allocation13 [shape = 'u8[16384]{0}', space=vmem, size = 0x4000, scoped, tag = 'input window, operand 8']
    #allocation14 [shape = 's32[2]{0}', space=sflag, size = 0x8, scoped, tag = 'scoped memory for tpu_custom_call.1']
    #allocation15 [shape = 'u8[1024]{0}', space=vmem, size = 0x400, scoped, tag = 'input window, operand 9']
    #allocation16 [shape = 'u8[1024]{0}', space=vmem, size = 0x400, scoped, tag = 'input window, operand 12']
    #allocation17 [shape = 's32[2]{0}', space=sflag, size = 0x8, scoped, tag = 'scoped memory for tpu_custom_call.1']
    #allocation18 [shape = 'u8[16384]{0}', space=vmem, size = 0x4000, scoped, tag = 'input window, operand 14']
    #allocation19 [shape = 'u8[8192]{0}', space=vmem, size = 0x2000, scoped, tag = 'output window, operand 0']
    %27 = vsyncpa [#allocation5], 0
    %s28 = scalar_lea.sflag [#allocation5], 1
    %29 = vsyncpa %s28, 0
    %30 = vsyncpa [#allocation8], 0
    %s31 = scalar_lea.sflag [#allocation8], 1
    %32 = vsyncpa %s31, 0
    %33 = vsyncpa [#allocation11], 0
    %s34 = scalar_lea.sflag [#allocation11], 1
    %35 = vsyncpa %s34, 0
    %36 = vsyncpa [#allocation14], 0
    %s37 = scalar_lea.sflag [#allocation14], 1
    %38 = vsyncpa %s37, 0
    %39 = vsyncpa [#allocation17], 0
    %s40 = scalar_lea.sflag [#allocation17], 1
    %41 = vsyncpa %s40, 0
    %42 = vsyncpa [#allocation6], 0
    %s43 = scalar_lea.sflag [#allocation6], 1
    %44 = vsyncpa %s43, 0
    loop: start=0, step=1, limit=6
    $region2: #{tpu_custom_call.1} parent=1 // loop_pre_header
      _
    $region3: #{tpu_custom_call.1} parent=1 // loop_header
      %s46 = sphi 0, %s50
      %p47 = scmp.ge.s32.totalorder %s46, 6
      %s53 = sphi 0, %s65
      %s54 = sphi 0, %s61
      %s55 = sphi 0, %s53
      %s56 = sphi 0, %s54
      %s57 = sphi 0, %s55
      %s58 = sphi 0, %s56
      %s68 = sphi 0, %s70
      %s71 = sphi 0, %s68
      %s72 = sphi 0, %s71
      %s88 = sphi 0, %s72
      %s94 = sphi 0, %s96
      %s97 = sphi 0, %s94
      %s98 = sphi 0, %s97
      %s114 = sphi 0, %s98
      %s120 = sphi 0, %s122
      %s123 = sphi 0, %s120
      %s124 = sphi 0, %s123
      %s140 = sphi 0, %s124
      %s146 = sphi 0, %s148
      %s149 = sphi 0, %s146
      %s150 = sphi 0, %s149
      %s166 = sphi 0, %s150
      %s172 = sphi 0, %s174
      %s175 = sphi 0, %s172
      %s176 = sphi 0, %s175
      %s192 = sphi 0, %s176
      %s198 = sphi 0, %s200
      %s201 = sphi 0, %s198
      %s202 = sphi 0, %s201
      %s218 = sphi 0, %s202
      %s224 = sphi 0, %s226
      %s227 = sphi 0, %s224
      %s228 = sphi 0, %s227
      %s244 = sphi 0, %s228
      %s250 = sphi 0, %s252
      %s253 = sphi 0, %s250
      %s254 = sphi 0, %s253
      %s270 = sphi 0, %s254
      %s276 = sphi 0, %s278
      %s279 = sphi 0, %s276
      %s280 = sphi 0, %s279
      %s296 = sphi 0, %s280
      %s302 = sphi 0, %s304
      %s305 = sphi 0, %s302
      %s306 = sphi 0, %s305
      %s322 = sphi 0, %s306
      %s328 = sphi 0, %s330
      %s331 = sphi 0, %s328
      %s332 = sphi 0, %s331
      %s348 = sphi 0, %s332
      %s354 = sphi 0, %s356
      %s357 = sphi 0, %s354
      %s358 = sphi 0, %s357
      %s374 = sphi 0, %s358
      %s380 = sphi 0, %s382
      %s383 = sphi 0, %s380
      %s384 = sphi 0, %s383
      %s400 = sphi 0, %s384
      %s406 = sphi 0, %s408
      %s409 = sphi 0, %s406
      %s410 = sphi 0, %s409
      %s426 = sphi 0, %s410
      %s432 = sphi 0, %s434
      %s435 = sphi 0, %s432
      %s436 = sphi 0, %s435
      %s452 = sphi 0, %s436
      %s458 = sphi 0, %s460
      %s461 = sphi 0, %s458
      %s462 = sphi 0, %s461
      %s478 = sphi 0, %s462
      %s484 = sphi 0, %s486
      %s487 = sphi 0, %s484
      %s488 = sphi 0, %s487
      %s504 = sphi 0, %s488
      %s510 = sphi 0, %s512
      %s513 = sphi 0, %s510
      %s514 = sphi 0, %s513
      %s530 = sphi 0, %s514
      %s534 = sphi 0, %s534
      %s536 = sphi 0, %s534
      %s537 = sphi 0, %s536
      %s551 = sphi 0, %s537
      %s555 = sphi 0, %s555
      %s557 = sphi 0, %s555
      %s558 = sphi 0, %s557
      %s572 = sphi 0, %s558
      %s576 = sphi 0, %s576
      %s578 = sphi 0, %s576
      %s579 = sphi 0, %s578
      %s593 = sphi 0, %s579
      %s597 = sphi 0, %s597
      %s599 = sphi 0, %s597
      %s600 = sphi 0, %s599
      %s614 = sphi 0, %s600
      %s620 = sphi 0, %s622
      %s623 = sphi 0, %s620
      %s624 = sphi 0, %s623
      %s640 = sphi 0, %s624
    $region4: #{tpu_custom_call.1} parent=1 // loop_header_branch
      %49 = sbr.rel (%p47) target = $region8
    $region5: #{tpu_custom_call.1} parent=1 // loop_body
      %s51 = ssub.s32 %s46, 1
      %s52 = ssub.s32 %s46, 2
      %s59 = sadd.s32 1, %s54
      %p60 = scmp.ge.s32.totalorder %s59, 2
      %s61 = scalar_select %p60, 0, %s59
      %s62 = sadd.s32 1, %s53
      %s63 = scalar_select %p60, %s62, %s53
      %p64 = scmp.ge.s32.totalorder %s63, 2
      %s65 = scalar_select %p64, 0, %s63
      %s66 = ssub.s32 %s53, %s65
      %p67 = scmp.eq.s32.totalorder %s66, 0
      %s69 = sadd.s32 %s68, 1
      %s70 = scalar_select %p67, %s68, %s69
      %p73 = pneg %p67
      %p74 = scmp.eq.s32.totalorder %s46, 3
      %p75 = por %p73, %p74
      %p76 = scmp.ne.s32.totalorder %s68, %s71
      %p77 = scmp.eq.s32.totalorder %s46, 0
      %p78 = por %p76, %p77
      %p79 = scmp.ne.s32.totalorder %s68, %s71
      %p80 = scmp.eq.s32.totalorder %s51, 3
      %p81 = por %p79, %p80
      %p82 = scmp.ne.s32.totalorder %s71, %s72
      %p83 = scmp.eq.s32.totalorder %s51, 0
      %p84 = por %p82, %p83
      %p85 = scmp.ne.s32.totalorder %s71, %s72
      %p86 = scmp.eq.s32.totalorder %s52, 3
      %p87 = por %p85, %p86
      %p89 = scmp.ne.s32.totalorder %s72, %s88
      %p90 = scmp.eq.s32.totalorder %s52, 0
      %p91 = por %p89, %p90
      %s92 = ssub.s32 %s53, %s65
      %p93 = scmp.eq.s32.totalorder %s92, 0
      %s95 = sadd.s32 %s94, 1
      %s96 = scalar_select %p93, %s94, %s95
      %p99 = pneg %p93
      %p100 = scmp.eq.s32.totalorder %s46, 3
      %p101 = por %p99, %p100
      %p102 = scmp.ne.s32.totalorder %s94, %s97
      %p103 = scmp.eq.s32.totalorder %s46, 0
      %p104 = por %p102, %p103
      %p105 = scmp.ne.s32.totalorder %s94, %s97
      %p106 = scmp.eq.s32.totalorder %s51, 3
      %p107 = por %p105, %p106
      %p108 = scmp.ne.s32.totalorder %s97, %s98
      %p109 = scmp.eq.s32.totalorder %s51, 0
      %p110 = por %p108, %p109
      %p111 = scmp.ne.s32.totalorder %s97, %s98
      %p112 = scmp.eq.s32.totalorder %s52, 3
      %p113 = por %p111, %p112
      %p115 = scmp.ne.s32.totalorder %s98, %s114
      %p116 = scmp.eq.s32.totalorder %s52, 0
      %p117 = por %p115, %p116
      %s118 = ssub.s32 %s54, %s61
      %p119 = scmp.eq.s32.totalorder %s118, 0
      %s121 = sadd.s32 %s120, 1
      %s122 = scalar_select %p119, %s120, %s121
      %p125 = pneg %p119
      %p126 = scmp.eq.s32.totalorder %s46, 3
      %p127 = por %p125, %p126
      %p128 = scmp.ne.s32.totalorder %s120, %s123
      %p129 = scmp.eq.s32.totalorder %s46, 0
      %p130 = por %p128, %p129
      %p131 = scmp.ne.s32.totalorder %s120, %s123
      %p132 = scmp.eq.s32.totalorder %s51, 3
      %p133 = por %p131, %p132
      %p134 = scmp.ne.s32.totalorder %s123, %s124
      %p135 = scmp.eq.s32.totalorder %s51, 0
      %p136 = por %p134, %p135
      %p137 = scmp.ne.s32.totalorder %s123, %s124
      %p138 = scmp.eq.s32.totalorder %s52, 3
      %p139 = por %p137, %p138
      %p141 = scmp.ne.s32.totalorder %s124, %s140
      %p142 = scmp.eq.s32.totalorder %s52, 0
      %p143 = por %p141, %p142
      %s144 = ssub.s32 %s54, %s61
      %p145 = scmp.eq.s32.totalorder %s144, 0
      %s147 = sadd.s32 %s146, 1
      %s148 = scalar_select %p145, %s146, %s147
      %p151 = pneg %p145
      %p152 = scmp.eq.s32.totalorder %s46, 3
      %p153 = por %p151, %p152
      %p154 = scmp.ne.s32.totalorder %s146, %s149
      %p155 = scmp.eq.s32.totalorder %s46, 0
      %p156 = por %p154, %p155
      %p157 = scmp.ne.s32.totalorder %s146, %s149
      %p158 = scmp.eq.s32.totalorder %s51, 3
      %p159 = por %p157, %p158
      %p160 = scmp.ne.s32.totalorder %s149, %s150
      %p161 = scmp.eq.s32.totalorder %s51, 0
      %p162 = por %p160, %p161
      %p163 = scmp.ne.s32.totalorder %s149, %s150
      %p164 = scmp.eq.s32.totalorder %s52, 3
      %p165 = por %p163, %p164
      %p167 = scmp.ne.s32.totalorder %s150, %s166
      %p168 = scmp.eq.s32.totalorder %s52, 0
      %p169 = por %p167, %p168
      %s170 = ssub.s32 %s54, %s61
      %p171 = scmp.eq.s32.totalorder %s170, 0
      %s173 = sadd.s32 %s172, 1
      %s174 = scalar_select %p171, %s172, %s173
      %p177 = pneg %p171
      %p178 = scmp.eq.s32.totalorder %s46, 3
      %p179 = por %p177, %p178
      %p180 = scmp.ne.s32.totalorder %s172, %s175
      %p181 = scmp.eq.s32.totalorder %s46, 0
      %p182 = por %p180, %p181
      %p183 = scmp.ne.s32.totalorder %s172, %s175
      %p184 = scmp.eq.s32.totalorder %s51, 3
      %p185 = por %p183, %p184
      %p186 = scmp.ne.s32.totalorder %s175, %s176
      %p187 = scmp.eq.s32.totalorder %s51, 0
      %p188 = por %p186, %p187
      %p189 = scmp.ne.s32.totalorder %s175, %s176
      %p190 = scmp.eq.s32.totalorder %s52, 3
      %p191 = por %p189, %p190
      %p193 = scmp.ne.s32.totalorder %s176, %s192
      %p194 = scmp.eq.s32.totalorder %s52, 0
      %p195 = por %p193, %p194
      %s196 = ssub.s32 %s54, %s61
      %p197 = scmp.eq.s32.totalorder %s196, 0
      %s199 = sadd.s32 %s198, 1
      %s200 = scalar_select %p197, %s198, %s199
      %p203 = pneg %p197
      %p204 = scmp.eq.s32.totalorder %s46, 3
      %p205 = por %p203, %p204
      %p206 = scmp.ne.s32.totalorder %s198, %s201
      %p207 = scmp.eq.s32.totalorder %s46, 0
      %p208 = por %p206, %p207
      %p209 = scmp.ne.s32.totalorder %s198, %s201
      %p210 = scmp.eq.s32.totalorder %s51, 3
      %p211 = por %p209, %p210
      %p212 = scmp.ne.s32.totalorder %s201, %s202
      %p213 = scmp.eq.s32.totalorder %s51, 0
      %p214 = por %p212, %p213
      %p215 = scmp.ne.s32.totalorder %s201, %s202
      %p216 = scmp.eq.s32.totalorder %s52, 3
      %p217 = por %p215, %p216
      %p219 = scmp.ne.s32.totalorder %s202, %s218
      %p220 = scmp.eq.s32.totalorder %s52, 0
      %p221 = por %p219, %p220
      %s222 = ssub.s32 %s54, %s61
      %p223 = scmp.eq.s32.totalorder %s222, 0
      %s225 = sadd.s32 %s224, 1
      %s226 = scalar_select %p223, %s224, %s225
      %p229 = pneg %p223
      %p230 = scmp.eq.s32.totalorder %s46, 3
      %p231 = por %p229, %p230
      %p232 = scmp.ne.s32.totalorder %s224, %s227
      %p233 = scmp.eq.s32.totalorder %s46, 0
      %p234 = por %p232, %p233
      %p235 = scmp.ne.s32.totalorder %s224, %s227
      %p236 = scmp.eq.s32.totalorder %s51, 3
      %p237 = por %p235, %p236
      %p238 = scmp.ne.s32.totalorder %s227, %s228
      %p239 = scmp.eq.s32.totalorder %s51, 0
      %p240 = por %p238, %p239
      %p241 = scmp.ne.s32.totalorder %s227, %s228
      %p242 = scmp.eq.s32.totalorder %s52, 3
      %p243 = por %p241, %p242
      %p245 = scmp.ne.s32.totalorder %s228, %s244
      %p246 = scmp.eq.s32.totalorder %s52, 0
      %p247 = por %p245, %p246
      %s248 = ssub.s32 %s54, %s61
      %p249 = scmp.eq.s32.totalorder %s248, 0
      %s251 = sadd.s32 %s250, 1
      %s252 = scalar_select %p249, %s250, %s251
      %p255 = pneg %p249
      %p256 = scmp.eq.s32.totalorder %s46, 3
      %p257 = por %p255, %p256
      %p258 = scmp.ne.s32.totalorder %s250, %s253
      %p259 = scmp.eq.s32.totalorder %s46, 0
      %p260 = por %p258, %p259
      %p261 = scmp.ne.s32.totalorder %s250, %s253
      %p262 = scmp.eq.s32.totalorder %s51, 3
      %p263 = por %p261, %p262
      %p264 = scmp.ne.s32.totalorder %s253, %s254
      %p265 = scmp.eq.s32.totalorder %s51, 0
      %p266 = por %p264, %p265
      %p267 = scmp.ne.s32.totalorder %s253, %s254
      %p268 = scmp.eq.s32.totalorder %s52, 3
      %p269 = por %p267, %p268
      %p271 = scmp.ne.s32.totalorder %s254, %s270
      %p272 = scmp.eq.s32.totalorder %s52, 0
      %p273 = por %p271, %p272
      %s274 = ssub.s32 %s54, %s61
      %p275 = scmp.eq.s32.totalorder %s274, 0
      %s277 = sadd.s32 %s276, 1
      %s278 = scalar_select %p275, %s276, %s277
      %p281 = pneg %p275
      %p282 = scmp.eq.s32.totalorder %s46, 3
      %p283 = por %p281, %p282
      %p284 = scmp.ne.s32.totalorder %s276, %s279
      %p285 = scmp.eq.s32.totalorder %s46, 0
      %p286 = por %p284, %p285
      %p287 = scmp.ne.s32.totalorder %s276, %s279
      %p288 = scmp.eq.s32.totalorder %s51, 3
      %p289 = por %p287, %p288
      %p290 = scmp.ne.s32.totalorder %s279, %s280
      %p291 = scmp.eq.s32.totalorder %s51, 0
      %p292 = por %p290, %p291
      %p293 = scmp.ne.s32.totalorder %s279, %s280
      %p294 = scmp.eq.s32.totalorder %s52, 3
      %p295 = por %p293, %p294
      %p297 = scmp.ne.s32.totalorder %s280, %s296
      %p298 = scmp.eq.s32.totalorder %s52, 0
      %p299 = por %p297, %p298
      %s300 = ssub.s32 %s54, %s61
      %p301 = scmp.eq.s32.totalorder %s300, 0
      %s303 = sadd.s32 %s302, 1
      %s304 = scalar_select %p301, %s302, %s303
      %p307 = pneg %p301
      %p308 = scmp.eq.s32.totalorder %s46, 3
      %p309 = por %p307, %p308
      %p310 = scmp.ne.s32.totalorder %s302, %s305
      %p311 = scmp.eq.s32.totalorder %s46, 0
      %p312 = por %p310, %p311
      %p313 = scmp.ne.s32.totalorder %s302, %s305
      %p314 = scmp.eq.s32.totalorder %s51, 3
      %p315 = por %p313, %p314
      %p316 = scmp.ne.s32.totalorder %s305, %s306
      %p317 = scmp.eq.s32.totalorder %s51, 0
      %p318 = por %p316, %p317
      %p319 = scmp.ne.s32.totalorder %s305, %s306
      %p320 = scmp.eq.s32.totalorder %s52, 3
      %p321 = por %p319, %p320
      %p323 = scmp.ne.s32.totalorder %s306, %s322
      %p324 = scmp.eq.s32.totalorder %s52, 0
      %p325 = por %p323, %p324
      %s326 = ssub.s32 %s54, %s61
      %p327 = scmp.eq.s32.totalorder %s326, 0
      %s329 = sadd.s32 %s328, 1
      %s330 = scalar_select %p327, %s328, %s329
      %p333 = pneg %p327
      %p334 = scmp.eq.s32.totalorder %s46, 3
      %p335 = por %p333, %p334
      %p336 = scmp.ne.s32.totalorder %s328, %s331
      %p337 = scmp.eq.s32.totalorder %s46, 0
      %p338 = por %p336, %p337
      %p339 = scmp.ne.s32.totalorder %s328, %s331
      %p340 = scmp.eq.s32.totalorder %s51, 3
      %p341 = por %p339, %p340
      %p342 = scmp.ne.s32.totalorder %s331, %s332
      %p343 = scmp.eq.s32.totalorder %s51, 0
      %p344 = por %p342, %p343
      %p345 = scmp.ne.s32.totalorder %s331, %s332
      %p346 = scmp.eq.s32.totalorder %s52, 3
      %p347 = por %p345, %p346
      %p349 = scmp.ne.s32.totalorder %s332, %s348
      %p350 = scmp.eq.s32.totalorder %s52, 0
      %p351 = por %p349, %p350
      %s352 = ssub.s32 %s54, %s61
      %p353 = scmp.eq.s32.totalorder %s352, 0
      %s355 = sadd.s32 %s354, 1
      %s356 = scalar_select %p353, %s354, %s355
      %p359 = pneg %p353
      %p360 = scmp.eq.s32.totalorder %s46, 3
      %p361 = por %p359, %p360
      %p362 = scmp.ne.s32.totalorder %s354, %s357
      %p363 = scmp.eq.s32.totalorder %s46, 0
      %p364 = por %p362, %p363
      %p365 = scmp.ne.s32.totalorder %s354, %s357
      %p366 = scmp.eq.s32.totalorder %s51, 3
      %p367 = por %p365, %p366
      %p368 = scmp.ne.s32.totalorder %s357, %s358
      %p369 = scmp.eq.s32.totalorder %s51, 0
      %p370 = por %p368, %p369
      %p371 = scmp.ne.s32.totalorder %s357, %s358
      %p372 = scmp.eq.s32.totalorder %s52, 3
      %p373 = por %p371, %p372
      %p375 = scmp.ne.s32.totalorder %s358, %s374
      %p376 = scmp.eq.s32.totalorder %s52, 0
      %p377 = por %p375, %p376
      %s378 = ssub.s32 %s54, %s61
      %p379 = scmp.eq.s32.totalorder %s378, 0
      %s381 = sadd.s32 %s380, 1
      %s382 = scalar_select %p379, %s380, %s381
      %p385 = pneg %p379
      %p386 = scmp.eq.s32.totalorder %s46, 3
      %p387 = por %p385, %p386
      %p388 = scmp.ne.s32.totalorder %s380, %s383
      %p389 = scmp.eq.s32.totalorder %s46, 0
      %p390 = por %p388, %p389
      %p391 = scmp.ne.s32.totalorder %s380, %s383
      %p392 = scmp.eq.s32.totalorder %s51, 3
      %p393 = por %p391, %p392
      %p394 = scmp.ne.s32.totalorder %s383, %s384
      %p395 = scmp.eq.s32.totalorder %s51, 0
      %p396 = por %p394, %p395
      %p397 = scmp.ne.s32.totalorder %s383, %s384
      %p398 = scmp.eq.s32.totalorder %s52, 3
      %p399 = por %p397, %p398
      %p401 = scmp.ne.s32.totalorder %s384, %s400
      %p402 = scmp.eq.s32.totalorder %s52, 0
      %p403 = por %p401, %p402
      %s404 = ssub.s32 %s54, %s61
      %p405 = scmp.eq.s32.totalorder %s404, 0
      %s407 = sadd.s32 %s406, 1
      %s408 = scalar_select %p405, %s406, %s407
      %p411 = pneg %p405
      %p412 = scmp.eq.s32.totalorder %s46, 3
      %p413 = por %p411, %p412
      %p414 = scmp.ne.s32.totalorder %s406, %s409
      %p415 = scmp.eq.s32.totalorder %s46, 0
      %p416 = por %p414, %p415
      %p417 = scmp.ne.s32.totalorder %s406, %s409
      %p418 = scmp.eq.s32.totalorder %s51, 3
      %p419 = por %p417, %p418
      %p420 = scmp.ne.s32.totalorder %s409, %s410
      %p421 = scmp.eq.s32.totalorder %s51, 0
      %p422 = por %p420, %p421
      %p423 = scmp.ne.s32.totalorder %s409, %s410
      %p424 = scmp.eq.s32.totalorder %s52, 3
      %p425 = por %p423, %p424
      %p427 = scmp.ne.s32.totalorder %s410, %s426
      %p428 = scmp.eq.s32.totalorder %s52, 0
      %p429 = por %p427, %p428
      %s430 = ssub.s32 %s54, %s61
      %p431 = scmp.eq.s32.totalorder %s430, 0
      %s433 = sadd.s32 %s432, 1
      %s434 = scalar_select %p431, %s432, %s433
      %p437 = pneg %p431
      %p438 = scmp.eq.s32.totalorder %s46, 3
      %p439 = por %p437, %p438
      %p440 = scmp.ne.s32.totalorder %s432, %s435
      %p441 = scmp.eq.s32.totalorder %s46, 0
      %p442 = por %p440, %p441
      %p443 = scmp.ne.s32.totalorder %s432, %s435
      %p444 = scmp.eq.s32.totalorder %s51, 3
      %p445 = por %p443, %p444
      %p446 = scmp.ne.s32.totalorder %s435, %s436
      %p447 = scmp.eq.s32.totalorder %s51, 0
      %p448 = por %p446, %p447
      %p449 = scmp.ne.s32.totalorder %s435, %s436
      %p450 = scmp.eq.s32.totalorder %s52, 3
      %p451 = por %p449, %p450
      %p453 = scmp.ne.s32.totalorder %s436, %s452
      %p454 = scmp.eq.s32.totalorder %s52, 0
      %p455 = por %p453, %p454
      %s456 = ssub.s32 %s54, %s61
      %p457 = scmp.eq.s32.totalorder %s456, 0
      %s459 = sadd.s32 %s458, 1
      %s460 = scalar_select %p457, %s458, %s459
      %p463 = pneg %p457
      %p464 = scmp.eq.s32.totalorder %s46, 3
      %p465 = por %p463, %p464
      %p466 = scmp.ne.s32.totalorder %s458, %s461
      %p467 = scmp.eq.s32.totalorder %s46, 0
      %p468 = por %p466, %p467
      %p469 = scmp.ne.s32.totalorder %s458, %s461
      %p470 = scmp.eq.s32.totalorder %s51, 3
      %p471 = por %p469, %p470
      %p472 = scmp.ne.s32.totalorder %s461, %s462
      %p473 = scmp.eq.s32.totalorder %s51, 0
      %p474 = por %p472, %p473
      %p475 = scmp.ne.s32.totalorder %s461, %s462
      %p476 = scmp.eq.s32.totalorder %s52, 3
      %p477 = por %p475, %p476
      %p479 = scmp.ne.s32.totalorder %s462, %s478
      %p480 = scmp.eq.s32.totalorder %s52, 0
      %p481 = por %p479, %p480
      %s482 = ssub.s32 %s54, %s61
      %p483 = scmp.eq.s32.totalorder %s482, 0
      %s485 = sadd.s32 %s484, 1
      %s486 = scalar_select %p483, %s484, %s485
      %p489 = pneg %p483
      %p490 = scmp.eq.s32.totalorder %s46, 3
      %p491 = por %p489, %p490
      %p492 = scmp.ne.s32.totalorder %s484, %s487
      %p493 = scmp.eq.s32.totalorder %s46, 0
      %p494 = por %p492, %p493
      %p495 = scmp.ne.s32.totalorder %s484, %s487
      %p496 = scmp.eq.s32.totalorder %s51, 3
      %p497 = por %p495, %p496
      %p498 = scmp.ne.s32.totalorder %s487, %s488
      %p499 = scmp.eq.s32.totalorder %s51, 0
      %p500 = por %p498, %p499
      %p501 = scmp.ne.s32.totalorder %s487, %s488
      %p502 = scmp.eq.s32.totalorder %s52, 3
      %p503 = por %p501, %p502
      %p505 = scmp.ne.s32.totalorder %s488, %s504
      %p506 = scmp.eq.s32.totalorder %s52, 0
      %p507 = por %p505, %p506
      %s508 = ssub.s32 %s54, %s61
      %p509 = scmp.eq.s32.totalorder %s508, 0
      %s511 = sadd.s32 %s510, 1
      %s512 = scalar_select %p509, %s510, %s511
      %p515 = pneg %p509
      %p516 = scmp.eq.s32.totalorder %s46, 3
      %p517 = por %p515, %p516
      %p518 = scmp.ne.s32.totalorder %s510, %s513
      %p519 = scmp.eq.s32.totalorder %s46, 0
      %p520 = por %p518, %p519
      %p521 = scmp.ne.s32.totalorder %s510, %s513
      %p522 = scmp.eq.s32.totalorder %s51, 3
      %p523 = por %p521, %p522
      %p524 = scmp.ne.s32.totalorder %s513, %s514
      %p525 = scmp.eq.s32.totalorder %s51, 0
      %p526 = por %p524, %p525
      %p527 = scmp.ne.s32.totalorder %s513, %s514
      %p528 = scmp.eq.s32.totalorder %s52, 3
      %p529 = por %p527, %p528
      %p531 = scmp.ne.s32.totalorder %s514, %s530
      %p532 = scmp.eq.s32.totalorder %s52, 0
      %p533 = por %p531, %p532
      %s535 = sadd.s32 %s534, 1
      %p538 = scmp.eq.s32.totalorder %s46, 3
      %p539 = scmp.ne.s32.totalorder %s534, %s536
      %p540 = scmp.eq.s32.totalorder %s46, 0
      %p541 = por %p539, %p540
      %p542 = scmp.ne.s32.totalorder %s534, %s536
      %p543 = scmp.eq.s32.totalorder %s51, 3
      %p544 = por %p542, %p543
      %p545 = scmp.ne.s32.totalorder %s536, %s537
      %p546 = scmp.eq.s32.totalorder %s51, 0
      %p547 = por %p545, %p546
      %p548 = scmp.ne.s32.totalorder %s536, %s537
      %p549 = scmp.eq.s32.totalorder %s52, 3
      %p550 = por %p548, %p549
      %p552 = scmp.ne.s32.totalorder %s537, %s551
      %p553 = scmp.eq.s32.totalorder %s52, 0
      %p554 = por %p552, %p553
      %s556 = sadd.s32 %s555, 1
      %p559 = scmp.eq.s32.totalorder %s46, 3
      %p560 = scmp.ne.s32.totalorder %s555, %s557
      %p561 = scmp.eq.s32.totalorder %s46, 0
      %p562 = por %p560, %p561
      %p563 = scmp.ne.s32.totalorder %s555, %s557
      %p564 = scmp.eq.s32.totalorder %s51, 3
      %p565 = por %p563, %p564
      %p566 = scmp.ne.s32.totalorder %s557, %s558
      %p567 = scmp.eq.s32.totalorder %s51, 0
      %p568 = por %p566, %p567
      %p569 = scmp.ne.s32.totalorder %s557, %s558
      %p570 = scmp.eq.s32.totalorder %s52, 3
      %p571 = por %p569, %p570
      %p573 = scmp.ne.s32.totalorder %s558, %s572
      %p574 = scmp.eq.s32.totalorder %s52, 0
      %p575 = por %p573, %p574
      %s577 = sadd.s32 %s576, 1
      %p580 = scmp.eq.s32.totalorder %s46, 3
      %p581 = scmp.ne.s32.totalorder %s576, %s578
      %p582 = scmp.eq.s32.totalorder %s46, 0
      %p583 = por %p581, %p582
      %p584 = scmp.ne.s32.totalorder %s576, %s578
      %p585 = scmp.eq.s32.totalorder %s51, 3
      %p586 = por %p584, %p585
      %p587 = scmp.ne.s32.totalorder %s578, %s579
      %p588 = scmp.eq.s32.totalorder %s51, 0
      %p589 = por %p587, %p588
      %p590 = scmp.ne.s32.totalorder %s578, %s579
      %p591 = scmp.eq.s32.totalorder %s52, 3
      %p592 = por %p590, %p591
      %p594 = scmp.ne.s32.totalorder %s579, %s593
      %p595 = scmp.eq.s32.totalorder %s52, 0
      %p596 = por %p594, %p595
      %s598 = sadd.s32 %s597, 1
      %p601 = scmp.eq.s32.totalorder %s46, 3
      %p602 = scmp.ne.s32.totalorder %s597, %s599
      %p603 = scmp.eq.s32.totalorder %s46, 0
      %p604 = por %p602, %p603
      %p605 = scmp.ne.s32.totalorder %s597, %s599
      %p606 = scmp.eq.s32.totalorder %s51, 3
      %p607 = por %p605, %p606
      %p608 = scmp.ne.s32.totalorder %s599, %s600
      %p609 = scmp.eq.s32.totalorder %s51, 0
      %p610 = por %p608, %p609
      %p611 = scmp.ne.s32.totalorder %s599, %s600
      %p612 = scmp.eq.s32.totalorder %s52, 3
      %p613 = por %p611, %p612
      %p615 = scmp.ne.s32.totalorder %s600, %s614
      %p616 = scmp.eq.s32.totalorder %s52, 0
      %p617 = por %p615, %p616
      %s618 = ssub.s32 %s53, %s65
      %p619 = scmp.eq.s32.totalorder %s618, 0
      %s621 = sadd.s32 %s620, 1
      %s622 = scalar_select %p619, %s620, %s621
      %p625 = pneg %p619
      %p626 = scmp.eq.s32.totalorder %s46, 3
      %p627 = por %p625, %p626
      %p628 = scmp.ne.s32.totalorder %s620, %s623
      %p629 = scmp.eq.s32.totalorder %s46, 0
      %p630 = por %p628, %p629
      %p631 = scmp.ne.s32.totalorder %s620, %s623
      %p632 = scmp.eq.s32.totalorder %s51, 3
      %p633 = por %p631, %p632
      %p634 = scmp.ne.s32.totalorder %s623, %s624
      %p635 = scmp.eq.s32.totalorder %s51, 0
      %p636 = por %p634, %p635
      %p637 = scmp.ne.s32.totalorder %s623, %s624
      %p638 = scmp.eq.s32.totalorder %s52, 3
      %p639 = por %p637, %p638
      %p641 = scmp.ne.s32.totalorder %s624, %s640
      %p642 = scmp.eq.s32.totalorder %s52, 0
      %p643 = por %p641, %p642
      %p644 = scmp.le.s32.totalorder 1, %s46
      %p645 = scmp.lt.s32.totalorder %s46, 5
      %p646 = pnand %p644, %p645
      %p647 = pneg %p646
      // Predicated region
      $region9: #{tpu_custom_call.1} parent=5 // pred_check
        _
      $region10: #{tpu_custom_call.1} parent=5 // pred_check_branch
        %649 = sbr.rel (%p646) target = $region12
      $region11: #{tpu_custom_call.1} parent=5 // pred_region
        %s650 = ssub.s32 %s46, 1
        // Predicated region
        $region13: #{tpu_custom_call.1} parent=11 // pred_check
          %p651 = pneg %p547
        $region14: #{tpu_custom_call.1} parent=11 // pred_check_branch
          %653 = sbr.rel (%p651) target = $region16
        $region15: #{tpu_custom_call.1} parent=11 // pred_region
          _
        $region16: #{tpu_custom_call.1} parent=11 // pred_fallthru
          _
        // Predicated region
        $region17: #{tpu_custom_call.1} parent=11 // pred_check
          %p654 = pneg %p568
        $region18: #{tpu_custom_call.1} parent=11 // pred_check_branch
          %656 = sbr.rel (%p654) target = $region20
        $region19: #{tpu_custom_call.1} parent=11 // pred_region
          _
        $region20: #{tpu_custom_call.1} parent=11 // pred_fallthru
          _
        // Predicated region
        $region21: #{tpu_custom_call.1} parent=11 // pred_check
          %p657 = pneg %p589
        $region22: #{tpu_custom_call.1} parent=11 // pred_check_branch
          %659 = sbr.rel (%p657) target = $region24
        $region23: #{tpu_custom_call.1} parent=11 // pred_region
          _
        $region24: #{tpu_custom_call.1} parent=11 // pred_fallthru
          _
        // Predicated region
        $region25: #{tpu_custom_call.1} parent=11 // pred_check
          %p660 = pneg %p610
        $region26: #{tpu_custom_call.1} parent=11 // pred_check_branch
          %662 = sbr.rel (%p660) target = $region28
        $region27: #{tpu_custom_call.1} parent=11 // pred_region
          _
        $region28: #{tpu_custom_call.1} parent=11 // pred_fallthru
          _
      $region12: #{tpu_custom_call.1} parent=5 // pred_fallthru
        _
      %p663 = scmp.lt.s32.totalorder %s46, 4
      // Predicated region
      $region29: #{tpu_custom_call.1} parent=5 // pred_check
        %p664 = pneg %p663
      $region30: #{tpu_custom_call.1} parent=5 // pred_check_branch
        %666 = sbr.rel (%p664) target = $region32
      $region31: #{tpu_custom_call.1} parent=5 // pred_region
        // Predicated region
        $region33: #{tpu_custom_call.1} parent=31 // pred_check
          %p667 = pneg %p78
        $region34: #{tpu_custom_call.1} parent=31 // pred_check_branch
          %669 = sbr.rel (%p667) target = $region36
        $region35: #{tpu_custom_call.1} parent=31 // pred_region
          %s670 = sand.u32 %s68, 1
          %s671 = scalar_lea.sflag [#allocation5], %s670
          %s672 = sand.u32 %s68, 1
          %s673 = smul.addr %s672, 8
          %s674 = scalar_lea.vmem [#allocation4], %s673
          %s676 = ssub.s32 128, 128
          %677 = vsyncadd %s671, %s676
          %s678 = smul.addr %s53, 128
          %s679 = scalar_lea.hbm %s0, %s678
          %s681 = sshll.u32 %s674, 4
          %s682 = int_to_ptr.vmem [resolvable:$true] %s681
          %684 = dma.hbm_to_vmem [thread:$0]  %s679, 128, %s682, %s671
        $region36: #{tpu_custom_call.1} parent=31 // pred_fallthru
          _
        // Predicated region
        $region37: #{tpu_custom_call.1} parent=31 // pred_check
          %p685 = pneg %p104
        $region38: #{tpu_custom_call.1} parent=31 // pred_check_branch
          %687 = sbr.rel (%p685) target = $region40
        $region39: #{tpu_custom_call.1} parent=31 // pred_region
          %s688 = sand.u32 %s46, 1
          %s689 = scalar_lea.sflag [#allocation8], %s688
          %s690 = sand.u32 %s94, 1
          %s691 = scalar_lea.vmem [#allocation7], %s690
          %s693 = ssub.s32 16, 16
          %694 = vsyncadd %s689, %s693
          %s695 = smul.addr %s53, 16
          %s696 = scalar_lea.hbm %s1, %s695
          %s698 = sshll.u32 %s691, 4
          %s699 = int_to_ptr.vmem [resolvable:$true] %s698
          %701 = dma.hbm_to_vmem [thread:$0]  %s696, 16, %s699, %s689
        $region40: #{tpu_custom_call.1} parent=31 // pred_fallthru
          _
        // Predicated region
        $region41: #{tpu_custom_call.1} parent=31 // pred_check
          %p702 = pneg %p130
        $region42: #{tpu_custom_call.1} parent=31 // pred_check_branch
          %704 = sbr.rel (%p702) target = $region44
        $region43: #{tpu_custom_call.1} parent=31 // pred_region
          %p705 = scmp.lt.s32.totalorder %s54, 1
          %s706 = scalar_select %p705, %s54, 1
          %s707 = smul.addr %s706, 4
          %s708 = smul.addr %s707, 4
          %s709 = scalar_lea.vmem %s2, %s708
        $region44: #{tpu_custom_call.1} parent=31 // pred_fallthru
          _
        // Predicated region
        $region45: #{tpu_custom_call.1} parent=31 // pred_check
          %p710 = pneg %p156
        $region46: #{tpu_custom_call.1} parent=31 // pred_check_branch
          %712 = sbr.rel (%p710) target = $region48
        $region47: #{tpu_custom_call.1} parent=31 // pred_region
          %s713 = sand.u32 %s46, 1
          %s714 = scalar_lea.sflag [#allocation8], %s713
          %s715 = sand.u32 %s146, 1
          %s716 = scalar_lea.vmem [#allocation9], %s715
          %s718 = ssub.s32 16, 16
          %719 = vsyncadd %s714, %s718
          %s720 = smul.addr %s54, 16
          %s721 = scalar_lea.hbm %s3, %s720
          %s723 = sshll.u32 %s716, 4
          %s724 = int_to_ptr.vmem [resolvable:$true] %s723
          %726 = dma.hbm_to_vmem [thread:$0]  %s721, 16, %s724, %s714
        $region48: #{tpu_custom_call.1} parent=31 // pred_fallthru
          _
        // Predicated region
        $region49: #{tpu_custom_call.1} parent=31 // pred_check
          %p727 = pneg %p182
        $region50: #{tpu_custom_call.1} parent=31 // pred_check_branch
          %729 = sbr.rel (%p727) target = $region52
        $region51: #{tpu_custom_call.1} parent=31 // pred_region
          %p730 = scmp.lt.s32.totalorder %s54, 1
          %s731 = scalar_select %p730, %s54, 1
          %s732 = smul.addr %s731, 4
          %s733 = smul.addr %s732, 4
          %s734 = scalar_lea.vmem %s4, %s733
        $region52: #{tpu_custom_call.1} parent=31 // pred_fallthru
          _
        // Predicated region
        $region53: #{tpu_custom_call.1} parent=31 // pred_check
          %p735 = pneg %p208
        $region54: #{tpu_custom_call.1} parent=31 // pred_check_branch
          %737 = sbr.rel (%p735) target = $region56
        $region55: #{tpu_custom_call.1} parent=31 // pred_region
          %s738 = sand.u32 %s46, 1
          %s739 = scalar_lea.sflag [#allocation11], %s738
          %s740 = sand.u32 %s198, 1
          %s741 = scalar_lea.vmem [#allocation10], %s740
          %s743 = ssub.s32 16, 16
          %744 = vsyncadd %s739, %s743
          %s745 = smul.addr %s54, 16
          %s746 = scalar_lea.hbm %s5, %s745
          %s748 = sshll.u32 %s741, 4
          %s749 = int_to_ptr.vmem [resolvable:$true] %s748
          %751 = dma.hbm_to_vmem [thread:$0]  %s746, 16, %s749, %s739
        $region56: #{tpu_custom_call.1} parent=31 // pred_fallthru
          _
        // Predicated region
        $region57: #{tpu_custom_call.1} parent=31 // pred_check
          %p752 = pneg %p234
        $region58: #{tpu_custom_call.1} parent=31 // pred_check_branch
          %754 = sbr.rel (%p752) target = $region60
        $region59: #{tpu_custom_call.1} parent=31 // pred_region
          %p755 = scmp.lt.s32.totalorder %s54, 1
          %s756 = scalar_select %p755, %s54, 1
          %s757 = smul.addr %s756, 4
          %s758 = smul.addr %s757, 4
          %s759 = scalar_lea.vmem %s6, %s758
        $region60: #{tpu_custom_call.1} parent=31 // pred_fallthru
          _
        // Predicated region
        $region61: #{tpu_custom_call.1} parent=31 // pred_check
          %p760 = pneg %p260
        $region62: #{tpu_custom_call.1} parent=31 // pred_check_branch
          %762 = sbr.rel (%p760) target = $region64
        $region63: #{tpu_custom_call.1} parent=31 // pred_region
          %s763 = sand.u32 %s46, 1
          %s764 = scalar_lea.sflag [#allocation11], %s763
          %s765 = sand.u32 %s250, 1
          %s766 = scalar_lea.vmem [#allocation12], %s765
          %s768 = ssub.s32 16, 16
          %769 = vsyncadd %s764, %s768
          %s770 = smul.addr %s54, 16
          %s771 = scalar_lea.hbm %s7, %s770
          %s773 = sshll.u32 %s766, 4
          %s774 = int_to_ptr.vmem [resolvable:$true] %s773
          %776 = dma.hbm_to_vmem [thread:$0]  %s771, 16, %s774, %s764
        $region64: #{tpu_custom_call.1} parent=31 // pred_fallthru
          _
        // Predicated region
        $region65: #{tpu_custom_call.1} parent=31 // pred_check
          %p777 = pneg %p286
        $region66: #{tpu_custom_call.1} parent=31 // pred_check_branch
          %779 = sbr.rel (%p777) target = $region68
        $region67: #{tpu_custom_call.1} parent=31 // pred_region
          %s780 = sand.u32 %s46, 1
          %s781 = scalar_lea.sflag [#allocation14], %s780
          %s782 = sand.u32 %s276, 1
          %s783 = smul.addr %s782, 16
          %s784 = scalar_lea.vmem [#allocation13], %s783
          %s786 = ssub.s32 256, 256
          %787 = vsyncadd %s781, %s786
          %s788 = smul.addr %s54, 4
          %s789 = smul.addr %s788, 64
          %s790 = scalar_lea.hbm %s8, %s789
          %s791 = sshll.u32 %s784, 4
          %s792 = int_to_ptr.vmem [resolvable:$true] %s791
          %797 = dma.hbm_to_vmem [thread:$0]  %s790, 256, %s792, %s781, 64, 64, 4
        $region68: #{tpu_custom_call.1} parent=31 // pred_fallthru
          _
        // Predicated region
        $region69: #{tpu_custom_call.1} parent=31 // pred_check
          %p798 = pneg %p312
        $region70: #{tpu_custom_call.1} parent=31 // pred_check_branch
          %800 = sbr.rel (%p798) target = $region72
        $region71: #{tpu_custom_call.1} parent=31 // pred_region
          %s801 = sand.u32 %s46, 1
          %s802 = scalar_lea.sflag [#allocation14], %s801
          %s803 = sand.u32 %s302, 1
          %s804 = scalar_lea.vmem [#allocation15], %s803
          %s806 = ssub.s32 16, 16
          %807 = vsyncadd %s802, %s806
          %s808 = smul.addr %s54, 16
          %s809 = scalar_lea.hbm %s9, %s808
          %s811 = sshll.u32 %s804, 4
          %s812 = int_to_ptr.vmem [resolvable:$true] %s811
          %814 = dma.hbm_to_vmem [thread:$0]  %s809, 16, %s812, %s802
        $region72: #{tpu_custom_call.1} parent=31 // pred_fallthru
          _
        // Predicated region
        $region73: #{tpu_custom_call.1} parent=31 // pred_check
          %p815 = pneg %p338
        $region74: #{tpu_custom_call.1} parent=31 // pred_check_branch
          %817 = sbr.rel (%p815) target = $region76
        $region75: #{tpu_custom_call.1} parent=31 // pred_region
          %p818 = scmp.lt.s32.totalorder %s54, 1
          %s819 = scalar_select %p818, %s54, 1
          %s820 = scalar_lea.vmem %s10, %s819
        $region76: #{tpu_custom_call.1} parent=31 // pred_fallthru
          _
        // Predicated region
        $region77: #{tpu_custom_call.1} parent=31 // pred_check
          %p821 = pneg %p364
        $region78: #{tpu_custom_call.1} parent=31 // pred_check_branch
          %823 = sbr.rel (%p821) target = $region80
        $region79: #{tpu_custom_call.1} parent=31 // pred_region
          %p824 = scmp.lt.s32.totalorder %s54, 1
          %s825 = scalar_select %p824, %s54, 1
          %s826 = scalar_lea.vmem %s11, %s825
        $region80: #{tpu_custom_call.1} parent=31 // pred_fallthru
          _
        // Predicated region
        $region81: #{tpu_custom_call.1} parent=31 // pred_check
          %p827 = pneg %p390
        $region82: #{tpu_custom_call.1} parent=31 // pred_check_branch
          %829 = sbr.rel (%p827) target = $region84
        $region83: #{tpu_custom_call.1} parent=31 // pred_region
          %s830 = sand.u32 %s46, 1
          %s831 = scalar_lea.sflag [#allocation17], %s830
          %s832 = sand.u32 %s380, 1
          %s833 = scalar_lea.vmem [#allocation16], %s832
          %s835 = ssub.s32 16, 16
          %836 = vsyncadd %s831, %s835
          %s837 = smul.addr %s54, 16
          %s838 = scalar_lea.hbm %s12, %s837
          %s840 = sshll.u32 %s833, 4
          %s841 = int_to_ptr.vmem [resolvable:$true] %s840
          %843 = dma.hbm_to_vmem [thread:$0]  %s838, 16, %s841, %s831
        $region84: #{tpu_custom_call.1} parent=31 // pred_fallthru
          _
        // Predicated region
        $region85: #{tpu_custom_call.1} parent=31 // pred_check
          %p844 = pneg %p416
        $region86: #{tpu_custom_call.1} parent=31 // pred_check_branch
          %846 = sbr.rel (%p844) target = $region88
        $region87: #{tpu_custom_call.1} parent=31 // pred_region
          %p847 = scmp.lt.s32.totalorder %s54, 1
          %s848 = scalar_select %p847, %s54, 1
          %s849 = scalar_lea.vmem %s13, %s848
        $region88: #{tpu_custom_call.1} parent=31 // pred_fallthru
          _
        // Predicated region
        $region89: #{tpu_custom_call.1} parent=31 // pred_check
          %p850 = pneg %p442
        $region90: #{tpu_custom_call.1} parent=31 // pred_check_branch
          %852 = sbr.rel (%p850) target = $region92
        $region91: #{tpu_custom_call.1} parent=31 // pred_region
          %s853 = sand.u32 %s46, 1
          %s854 = scalar_lea.sflag [#allocation17], %s853
          %s855 = sand.u32 %s432, 1
          %s856 = smul.addr %s855, 16
          %s857 = scalar_lea.vmem [#allocation18], %s856
          %s859 = ssub.s32 256, 256
          %860 = vsyncadd %s854, %s859
          %s861 = smul.addr %s54, 4
          %s862 = smul.addr %s861, 64
          %s863 = scalar_lea.hbm %s14, %s862
          %s864 = sshll.u32 %s857, 4
          %s865 = int_to_ptr.vmem [resolvable:$true] %s864
          %870 = dma.hbm_to_vmem [thread:$0]  %s863, 256, %s865, %s854, 64, 64, 4
        $region92: #{tpu_custom_call.1} parent=31 // pred_fallthru
          _
        // Predicated region
        $region93: #{tpu_custom_call.1} parent=31 // pred_check
          %p871 = pneg %p468
        $region94: #{tpu_custom_call.1} parent=31 // pred_check_branch
          %873 = sbr.rel (%p871) target = $region96
        $region95: #{tpu_custom_call.1} parent=31 // pred_region
          %p874 = scmp.lt.s32.totalorder %s54, 1
          %s875 = scalar_select %p874, %s54, 1
          %s876 = scalar_lea.vmem %s15, %s875
        $region96: #{tpu_custom_call.1} parent=31 // pred_fallthru
          _
        // Predicated region
        $region97: #{tpu_custom_call.1} parent=31 // pred_check
          %p877 = pneg %p494
        $region98: #{tpu_custom_call.1} parent=31 // pred_check_branch
          %879 = sbr.rel (%p877) target = $region100
        $region99: #{tpu_custom_call.1} parent=31 // pred_region
          %p880 = scmp.lt.s32.totalorder %s54, 1
          %s881 = scalar_select %p880, %s54, 1
          %s882 = smul.addr %s881, 8
          %s883 = smul.addr %s882, 4
          %s884 = scalar_lea.vmem %s16, %s883
        $region100: #{tpu_custom_call.1} parent=31 // pred_fallthru
          _
        // Predicated region
        $region101: #{tpu_custom_call.1} parent=31 // pred_check
          %p885 = pneg %p520
        $region102: #{tpu_custom_call.1} parent=31 // pred_check_branch
          %887 = sbr.rel (%p885) target = $region104
        $region103: #{tpu_custom_call.1} parent=31 // pred_region
          %p888 = scmp.lt.s32.totalorder %s54, 1
          %s889 = scalar_select %p888, %s54, 1
          %s890 = scalar_lea.vmem %s17, %s889
        $region104: #{tpu_custom_call.1} parent=31 // pred_fallthru
          _
      $region32: #{tpu_custom_call.1} parent=5 // pred_fallthru
        _
      %p891 = scmp.le.s32.totalorder 1, %s46
      %p892 = scmp.lt.s32.totalorder %s46, 5
      %p893 = pnand %p891, %p892
      %p894 = pneg %p893
      // Predicated region
      $region105: #{tpu_custom_call.1} parent=5 // pred_check
        _
      $region106: #{tpu_custom_call.1} parent=5 // pred_check_branch
        %896 = sbr.rel (%p893) target = $region108
      $region107: #{tpu_custom_call.1} parent=5 // pred_region
        %s897 = ssub.s32 %s46, 1
        %s898 = sand.u32 %s71, 1
        %s899 = scalar_lea.sflag [#allocation5], %s898
        %s900 = sand.u32 %s71, 1
        %s901 = smul.addr %s900, 8
        %s902 = scalar_lea.vmem [#allocation4], %s901
        // Predicated region
        $region109: #{tpu_custom_call.1} parent=107 // pred_check
          %p903 = pneg %p84
        $region110: #{tpu_custom_call.1} parent=107 // pred_check_branch
          %905 = sbr.rel (%p903) target = $region112
        $region111: #{tpu_custom_call.1} parent=107 // pred_region
          %906 = dma.done %s899, 128
        $region112: #{tpu_custom_call.1} parent=107 // pred_fallthru
          _
        %s907 = sand.u32 %s51, 1
        %s908 = scalar_lea.sflag [#allocation8], %s907
        %s909 = sand.u32 %s97, 1
        %s910 = scalar_lea.vmem [#allocation7], %s909
        // Predicated region
        $region113: #{tpu_custom_call.1} parent=107 // pred_check
          %p911 = pneg %p110
        $region114: #{tpu_custom_call.1} parent=107 // pred_check_branch
          %913 = sbr.rel (%p911) target = $region116
        $region115: #{tpu_custom_call.1} parent=107 // pred_region
          %914 = dma.done %s908, 16
        $region116: #{tpu_custom_call.1} parent=107 // pred_fallthru
          _
        %s915 = sand.u32 %s51, 1
        %s916 = scalar_lea.sflag [#allocation8], %s915
        %s917 = sand.u32 %s149, 1
        %s918 = scalar_lea.vmem [#allocation9], %s917
        // Predicated region
        $region117: #{tpu_custom_call.1} parent=107 // pred_check
          %p919 = pneg %p162
        $region118: #{tpu_custom_call.1} parent=107 // pred_check_branch
          %921 = sbr.rel (%p919) target = $region120
        $region119: #{tpu_custom_call.1} parent=107 // pred_region
          %922 = dma.done %s916, 16
        $region120: #{tpu_custom_call.1} parent=107 // pred_fallthru
          _
        %s923 = sand.u32 %s51, 1
        %s924 = scalar_lea.sflag [#allocation11], %s923
        %s925 = sand.u32 %s201, 1
        %s926 = scalar_lea.vmem [#allocation10], %s925
        // Predicated region
        $region121: #{tpu_custom_call.1} parent=107 // pred_check
          %p927 = pneg %p214
        $region122: #{tpu_custom_call.1} parent=107 // pred_check_branch
          %929 = sbr.rel (%p927) target = $region124
        $region123: #{tpu_custom_call.1} parent=107 // pred_region
          %930 = dma.done %s924, 16
        $region124: #{tpu_custom_call.1} parent=107 // pred_fallthru
          _
        %s931 = sand.u32 %s51, 1
        %s932 = scalar_lea.sflag [#allocation11], %s931
        %s933 = sand.u32 %s253, 1
        %s934 = scalar_lea.vmem [#allocation12], %s933
        // Predicated region
        $region125: #{tpu_custom_call.1} parent=107 // pred_check
          %p935 = pneg %p266
        $region126: #{tpu_custom_call.1} parent=107 // pred_check_branch
          %937 = sbr.rel (%p935) target = $region128
        $region127: #{tpu_custom_call.1} parent=107 // pred_region
          %938 = dma.done %s932, 16
        $region128: #{tpu_custom_call.1} parent=107 // pred_fallthru
          _
        %s939 = sand.u32 %s51, 1
        %s940 = scalar_lea.sflag [#allocation14], %s939
        %s941 = sand.u32 %s279, 1
        %s942 = smul.addr %s941, 16
        %s943 = scalar_lea.vmem [#allocation13], %s942
        // Predicated region
        $region129: #{tpu_custom_call.1} parent=107 // pred_check
          %p944 = pneg %p292
        $region130: #{tpu_custom_call.1} parent=107 // pred_check_branch
          %946 = sbr.rel (%p944) target = $region132
        $region131: #{tpu_custom_call.1} parent=107 // pred_region
          %947 = dma.done %s940, 256
        $region132: #{tpu_custom_call.1} parent=107 // pred_fallthru
          _
        %s948 = sand.u32 %s51, 1
        %s949 = scalar_lea.sflag [#allocation14], %s948
        %s950 = sand.u32 %s305, 1
        %s951 = scalar_lea.vmem [#allocation15], %s950
        // Predicated region
        $region133: #{tpu_custom_call.1} parent=107 // pred_check
          %p952 = pneg %p318
        $region134: #{tpu_custom_call.1} parent=107 // pred_check_branch
          %954 = sbr.rel (%p952) target = $region136
        $region135: #{tpu_custom_call.1} parent=107 // pred_region
          %955 = dma.done %s949, 16
        $region136: #{tpu_custom_call.1} parent=107 // pred_fallthru
          _
        %s956 = sand.u32 %s51, 1
        %s957 = scalar_lea.sflag [#allocation17], %s956
        %s958 = sand.u32 %s383, 1
        %s959 = scalar_lea.vmem [#allocation16], %s958
        // Predicated region
        $region137: #{tpu_custom_call.1} parent=107 // pred_check
          %p960 = pneg %p396
        $region138: #{tpu_custom_call.1} parent=107 // pred_check_branch
          %962 = sbr.rel (%p960) target = $region140
        $region139: #{tpu_custom_call.1} parent=107 // pred_region
          %963 = dma.done %s957, 16
        $region140: #{tpu_custom_call.1} parent=107 // pred_fallthru
          _
        %s964 = sand.u32 %s51, 1
        %s965 = scalar_lea.sflag [#allocation17], %s964
        %s966 = sand.u32 %s435, 1
        %s967 = smul.addr %s966, 16
        %s968 = scalar_lea.vmem [#allocation18], %s967
        // Predicated region
        $region141: #{tpu_custom_call.1} parent=107 // pred_check
          %p969 = pneg %p448
        $region142: #{tpu_custom_call.1} parent=107 // pred_check_branch
          %971 = sbr.rel (%p969) target = $region144
        $region143: #{tpu_custom_call.1} parent=107 // pred_region
          %972 = dma.done %s965, 256
        $region144: #{tpu_custom_call.1} parent=107 // pred_fallthru
          _
        %s973 = sand.u32 %s71, 1
        %s974 = scalar_lea.sflag [#allocation5], %s973
        %s975 = sand.u32 %s71, 1
        %s976 = smul.addr %s975, 8
        %s977 = scalar_lea.vmem [#allocation4], %s976
        %p978 = pneg %p84
        %p979 = pneg %p81
        %s980 = sand.u32 %s51, 1
        %s981 = scalar_lea.sflag [#allocation8], %s980
        %s982 = sand.u32 %s97, 1
        %s983 = scalar_lea.vmem [#allocation7], %s982
        %p984 = pneg %p110
        %p985 = pneg %p107
        %p986 = scmp.lt.s32.totalorder %s56, 1
        %s987 = scalar_select %p986, %s56, 1
        %s988 = smul.addr %s987, 4
        %s989 = smul.addr %s988, 4
        %s990 = scalar_lea.vmem %s2, %s989
        %p991 = pneg %p136
        %p992 = pneg %p133
        %s993 = sand.u32 %s51, 1
        %s994 = scalar_lea.sflag [#allocation8], %s993
        %s995 = sand.u32 %s149, 1
        %s996 = scalar_lea.vmem [#allocation9], %s995
        %p997 = pneg %p162
        %p998 = pneg %p159
        %p999 = scmp.lt.s32.totalorder %s56, 1
        %s1000 = scalar_select %p999, %s56, 1
        %s1001 = smul.addr %s1000, 4
        %s1002 = smul.addr %s1001, 4
        %s1003 = scalar_lea.vmem %s4, %s1002
        %p1004 = pneg %p188
        %p1005 = pneg %p185
        %s1006 = sand.u32 %s51, 1
        %s1007 = scalar_lea.sflag [#allocation11], %s1006
        %s1008 = sand.u32 %s201, 1
        %s1009 = scalar_lea.vmem [#allocation10], %s1008
        %p1010 = pneg %p214
        %p1011 = pneg %p211
        %p1012 = scmp.lt.s32.totalorder %s56, 1
        %s1013 = scalar_select %p1012, %s56, 1
        %s1014 = smul.addr %s1013, 4
        %s1015 = smul.addr %s1014, 4
        %s1016 = scalar_lea.vmem %s6, %s1015
        %p1017 = pneg %p240
        %p1018 = pneg %p237
        %s1019 = sand.u32 %s51, 1
        %s1020 = scalar_lea.sflag [#allocation11], %s1019
        %s1021 = sand.u32 %s253, 1
        %s1022 = scalar_lea.vmem [#allocation12], %s1021
        %p1023 = pneg %p266
        %p1024 = pneg %p263
        %s1025 = sand.u32 %s51, 1
        %s1026 = scalar_lea.sflag [#allocation14], %s1025
        %s1027 = sand.u32 %s279, 1
        %s1028 = smul.addr %s1027, 16
        %s1029 = scalar_lea.vmem [#allocation13], %s1028
        %p1030 = pneg %p292
        %p1031 = pneg %p289
        %s1032 = sand.u32 %s51, 1
        %s1033 = scalar_lea.sflag [#allocation14], %s1032
        %s1034 = sand.u32 %s305, 1
        %s1035 = scalar_lea.vmem [#allocation15], %s1034
        %p1036 = pneg %p318
        %p1037 = pneg %p315
        %p1038 = scmp.lt.s32.totalorder %s56, 1
        %s1039 = scalar_select %p1038, %s56, 1
        %s1040 = scalar_lea.vmem %s10, %s1039
        %p1041 = pneg %p344
        %p1042 = pneg %p341
        %p1043 = scmp.lt.s32.totalorder %s56, 1
        %s1044 = scalar_select %p1043, %s56, 1
        %s1045 = scalar_lea.vmem %s11, %s1044
        %p1046 = pneg %p370
        %p1047 = pneg %p367
        %s1048 = sand.u32 %s51, 1
        %s1049 = scalar_lea.sflag [#allocation17], %s1048
        %s1050 = sand.u32 %s383, 1
        %s1051 = scalar_lea.vmem [#allocation16], %s1050
        %p1052 = pneg %p396
        %p1053 = pneg %p393
        %p1054 = scmp.lt.s32.totalorder %s56, 1
        %s1055 = scalar_select %p1054, %s56, 1
        %s1056 = scalar_lea.vmem %s13, %s1055
        %p1057 = pneg %p422
        %p1058 = pneg %p419
        %s1059 = sand.u32 %s51, 1
        %s1060 = scalar_lea.sflag [#allocation17], %s1059
        %s1061 = sand.u32 %s435, 1
        %s1062 = smul.addr %s1061, 16
        %s1063 = scalar_lea.vmem [#allocation18], %s1062
        %p1064 = pneg %p448
        %p1065 = pneg %p445
        %p1066 = scmp.lt.s32.totalorder %s56, 1
        %s1067 = scalar_select %p1066, %s56, 1
        %s1068 = scalar_lea.vmem %s15, %s1067
        %p1069 = pneg %p474
        %p1070 = pneg %p471
        %p1071 = scmp.lt.s32.totalorder %s56, 1
        %s1072 = scalar_select %p1071, %s56, 1
        %s1073 = smul.addr %s1072, 8
        %s1074 = smul.addr %s1073, 4
        %s1075 = scalar_lea.vmem %s16, %s1074
        %p1076 = pneg %p500
        %p1077 = pneg %p497
        %p1078 = scmp.lt.s32.totalorder %s56, 1
        %s1079 = scalar_select %p1078, %s56, 1
        %s1080 = scalar_lea.vmem %s17, %s1079
        %p1081 = pneg %p526
        %p1082 = pneg %p523
        %p1083 = pneg %p547
        %p1084 = pneg %p544
        %p1085 = pneg %p568
        %p1086 = pneg %p565
        %p1087 = pneg %p589
        %p1088 = pneg %p586
        %p1089 = pneg %p610
        %p1090 = pneg %p607
        %p1091 = pneg %p636
        %p1092 = pneg %p633
        %s1093 = sand.u32 %s623, 1
        %s1094 = scalar_lea.sflag [#allocation6], %s1093
        %s1095 = sand.u32 %s623, 1
        %s1096 = smul.addr %s1095, 8
        %s1097 = scalar_lea.vmem [#allocation19], %s1096
        %p1098 = scmp.lt.s32.totalorder %s56, 1
        %s1099 = scalar_select %p1098, %s56, 1
        %s1100 = smul.addr %s1099, 4
        %s1101 = smul.addr %s1100, 4
        %s1102 = scalar_lea.vmem %s2, %s1101
        %p1103 = scmp.lt.s32.totalorder %s56, 1
        %s1104 = scalar_select %p1103, %s56, 1
        %s1105 = smul.addr %s1104, 4
        %s1106 = smul.addr %s1105, 4
        %s1107 = scalar_lea.vmem %s4, %s1106
        %p1108 = scmp.lt.s32.totalorder %s56, 1
        %s1109 = scalar_select %p1108, %s56, 1
        %s1110 = smul.addr %s1109, 4
        %s1111 = smul.addr %s1110, 4
        %s1112 = scalar_lea.vmem %s6, %s1111
        %p1113 = scmp.lt.s32.totalorder %s56, 1
        %s1114 = scalar_select %p1113, %s56, 1
        %s1115 = scalar_lea.vmem %s10, %s1114
        %p1116 = scmp.lt.s32.totalorder %s56, 1
        %s1117 = scalar_select %p1116, %s56, 1
        %s1118 = scalar_lea.vmem %s11, %s1117
        %p1119 = scmp.lt.s32.totalorder %s56, 1
        %s1120 = scalar_select %p1119, %s56, 1
        %s1121 = scalar_lea.vmem %s13, %s1120
        %p1122 = scmp.lt.s32.totalorder %s56, 1
        %s1123 = scalar_select %p1122, %s56, 1
        %s1124 = scalar_lea.vmem %s15, %s1123
        %p1125 = scmp.lt.s32.totalorder %s56, 1
        %s1126 = scalar_select %p1125, %s56, 1
        %s1127 = smul.addr %s1126, 8
        %s1128 = smul.addr %s1127, 4
        %s1129 = scalar_lea.vmem %s16, %s1128
        %p1130 = scmp.lt.s32.totalorder %s56, 1
        %s1131 = scalar_select %p1130, %s56, 1
        %s1132 = scalar_lea.vmem %s17, %s1131
        %p1134 = scmp.eq.s32.totalorder %s56, 0
        // Predicated region
        $region145: #{tpu_custom_call.1} parent=107 // pred_check
          %p1135 = pneg %p1134
        $region146: #{tpu_custom_call.1} parent=107 // pred_check_branch
          %1137 = sbr.rel (%p1135) target = $region148
        $region147: #{tpu_custom_call.1} parent=107 // pred_region
          %v1138 = vld [vmem:[%s902] sm:$0xff]
          %vm1139 = vcmask 261120
          %1140 = vst.msk [vmem:[#allocation2] sm:$0xff] %vm1139, %v1138
        $region148: #{tpu_custom_call.1} parent=107 // pred_fallthru
          _
        %v1141 = vld [vmem:[#allocation2] sm:$0xff]
        %v1142 = vpack.c.bf16 %v1141, %v1141
        %v1143 = vld [vmem:[%s1102] sm:$0xf]
        %v1144 = vld [vmem:[%s1102 + $0x4] sm:$0xf]
        %v1145 = vld [vmem:[%s1102 + $0x8] sm:$0xf]
        %v1146 = vld [vmem:[%s1102 + $0xc] sm:$0xf]
        %v1147 = vld [vmem:[%s918] sm:$0x1]
        %v1149 = vlaneseq
        %v1150 = vshrl.u32 %v1149, 7
        %v1151 = vsub.s32 0, %v1150
        %v1152 = vrot.slane %v1147, %v1151
        %v1158 = vunpack.c.l.b16 %v1143
        %v1159 = vunpack.c.l.b16 %v1144
        %v1160 = vunpack.c.l.b16 %v1145
        %v1161 = vunpack.c.l.b16 %v1146
        %v1162 = vpack.c.b16 %v1159, %v1158
        %v1163 = vpack.c.b16 %v1161, %v1160
        %vm1166 = vcmask 261120
        %v1168 = vsel %vm1166, %v1142, 0
        %1170 = vmatprep.subr.bf16.mxu0 0
        %1171 = vmatpush1.bf16.msra.mxu0 0
        %1172 = vmatprep.subr.bf16.mxu0 0
        %1173 = vmatpush1.bf16.msra.mxu0 0
        %1174 = vmatprep.subr.bf16.mxu0 0
        %1175 = vmatpush1.bf16.msra.mxu0 0
        %1176 = vmatprep.subr.bf16.mxu0 0
        %1177 = vmatpush1.bf16.msra.mxu0 0
        %1178 = vmatprep.subr.bf16.mxu0 0
        %1179 = vmatpush1.bf16.msra.mxu0 0
        %1180 = vmatprep.subr.bf16.mxu0 0
        %1181 = vmatpush1.bf16.msra.mxu0 0
        %1182 = vmatprep.subr.bf16.mxu0 0
        %1183 = vmatpush1.bf16.msra.mxu0 %v1163
        %1184 = vmatprep.subr.bf16.mxu0 0
        %1185 = vmatpush1.bf16.msra.mxu0 %v1162
        %1186 = vmatprep.subr.bf16.mxu0 0
        %1187 = vmatpush2.bf16.msra.mxu0 0
        %1188 = vmatprep.subr.bf16.mxu0 0
        %1189 = vmatpush2.bf16.msra.mxu0 0
        %1190 = vmatprep.subr.bf16.mxu0 0
        %1191 = vmatpush2.bf16.msra.mxu0 0
        %1192 = vmatprep.subr.bf16.mxu0 0
        %1193 = vmatpush2.bf16.msra.mxu0 0
        %1194 = vmatprep.subr.bf16.mxu0 0
        %1195 = vmatpush2.bf16.msra.mxu0 0
        %1196 = vmatprep.subr.bf16.mxu0 0
        %1197 = vmatpush2.bf16.msra.mxu0 0
        %1198 = vmatprep.subr.bf16.mxu0 0
        %1199 = vmatpush2.bf16.msra.mxu0 0
        %1200 = vmatprep.subr.bf16.mxu0 0
        %1201 = vmatpush2.bf16.msra.mxu0 0
        %1202 = vmatprep.mubr.bf16.mxu0 0
        %1203 = vmatmul.mubr.bf16.gmra.mxu0 %v1168
        %v1204 = vpop.f32.mrf.mxu0
        %v1205 = vadd.f32 %v1152, %v1204
        %v1206 = vpop.f32.mrf.mxu0
        %v1207 = vpop.f32.mrf.mxu0
        %v1208 = vpop.f32.mrf.mxu0
        %1209 = vdwg.mxu0
        %v1210 = vld [vmem:[%s1107] sm:$0xf]
        %v1211 = vld [vmem:[%s1107 + $0x4] sm:$0xf]
        %v1212 = vld [vmem:[%s1107 + $0x8] sm:$0xf]
        %v1213 = vld [vmem:[%s1107 + $0xc] sm:$0xf]
        %v1214 = vld [vmem:[%s926] sm:$0x1]
        %v1216 = vlaneseq
        %v1217 = vshrl.u32 %v1216, 7
        %v1218 = vsub.s32 0, %v1217
        %v1219 = vrot.slane %v1214, %v1218
        %v1225 = vunpack.c.l.b16 %v1210
        %v1226 = vunpack.c.l.b16 %v1211
        %v1227 = vunpack.c.l.b16 %v1212
        %v1228 = vunpack.c.l.b16 %v1213
        %v1229 = vpack.c.b16 %v1226, %v1225
        %v1230 = vpack.c.b16 %v1228, %v1227
        %1233 = vmatprep.subr.bf16.mxu0 0
        %1234 = vmatpush1.bf16.msra.mxu0 0
        %1235 = vmatprep.subr.bf16.mxu0 0
        %1236 = vmatpush1.bf16.msra.mxu0 0
        %1237 = vmatprep.subr.bf16.mxu0 0
        %1238 = vmatpush1.bf16.msra.mxu0 0
        %1239 = vmatprep.subr.bf16.mxu0 0
        %1240 = vmatpush1.bf16.msra.mxu0 0
        %1241 = vmatprep.subr.bf16.mxu0 0
        %1242 = vmatpush1.bf16.msra.mxu0 0
        %1243 = vmatprep.subr.bf16.mxu0 0
        %1244 = vmatpush1.bf16.msra.mxu0 0
        %1245 = vmatprep.subr.bf16.mxu0 0
        %1246 = vmatpush1.bf16.msra.mxu0 %v1230
        %1247 = vmatprep.subr.bf16.mxu0 0
        %1248 = vmatpush1.bf16.msra.mxu0 %v1229
        %1249 = vmatprep.subr.bf16.mxu0 0
        %1250 = vmatpush2.bf16.msra.mxu0 0
        %1251 = vmatprep.subr.bf16.mxu0 0
        %1252 = vmatpush2.bf16.msra.mxu0 0
        %1253 = vmatprep.subr.bf16.mxu0 0
        %1254 = vmatpush2.bf16.msra.mxu0 0
        %1255 = vmatprep.subr.bf16.mxu0 0
        %1256 = vmatpush2.bf16.msra.mxu0 0
        %1257 = vmatprep.subr.bf16.mxu0 0
        %1258 = vmatpush2.bf16.msra.mxu0 0
        %1259 = vmatprep.subr.bf16.mxu0 0
        %1260 = vmatpush2.bf16.msra.mxu0 0
        %1261 = vmatprep.subr.bf16.mxu0 0
        %1262 = vmatpush2.bf16.msra.mxu0 0
        %1263 = vmatprep.subr.bf16.mxu0 0
        %1264 = vmatpush2.bf16.msra.mxu0 0
        %1265 = vmatprep.mubr.bf16.mxu0 0
        %1266 = vmatmul.mubr.bf16.gmra.mxu0 %v1168
        %v1267 = vpop.f32.mrf.mxu0
        %v1268 = vadd.f32 %v1219, %v1267
        %v1269 = vpop.f32.mrf.mxu0
        %v1270 = vpop.f32.mrf.mxu0
        %v1271 = vpop.f32.mrf.mxu0
        %1272 = vdwg.mxu0
        %v1273 = vld [vmem:[%s1112] sm:$0xf]
        %v1274 = vld [vmem:[%s1112 + $0x4] sm:$0xf]
        %v1275 = vld [vmem:[%s1112 + $0x8] sm:$0xf]
        %v1276 = vld [vmem:[%s1112 + $0xc] sm:$0xf]
        %v1277 = vld [vmem:[%s934] sm:$0x1]
        %v1279 = vlaneseq
        %v1280 = vshrl.u32 %v1279, 7
        %v1281 = vsub.s32 0, %v1280
        %v1282 = vrot.slane %v1277, %v1281
        %v1288 = vunpack.c.l.b16 %v1273
        %v1289 = vunpack.c.l.b16 %v1274
        %v1290 = vunpack.c.l.b16 %v1275
        %v1291 = vunpack.c.l.b16 %v1276
        %v1292 = vpack.c.b16 %v1289, %v1288
        %v1293 = vpack.c.b16 %v1291, %v1290
        %1296 = vmatprep.subr.bf16.mxu0 0
        %1297 = vmatpush1.bf16.msra.mxu0 0
        %1298 = vmatprep.subr.bf16.mxu0 0
        %1299 = vmatpush1.bf16.msra.mxu0 0
        %1300 = vmatprep.subr.bf16.mxu0 0
        %1301 = vmatpush1.bf16.msra.mxu0 0
        %1302 = vmatprep.subr.bf16.mxu0 0
        %1303 = vmatpush1.bf16.msra.mxu0 0
        %1304 = vmatprep.subr.bf16.mxu0 0
        %1305 = vmatpush1.bf16.msra.mxu0 0
        %1306 = vmatprep.subr.bf16.mxu0 0
        %1307 = vmatpush1.bf16.msra.mxu0 0
        %1308 = vmatprep.subr.bf16.mxu0 0
        %1309 = vmatpush1.bf16.msra.mxu0 %v1293
        %1310 = vmatprep.subr.bf16.mxu0 0
        %1311 = vmatpush1.bf16.msra.mxu0 %v1292
        %1312 = vmatprep.subr.bf16.mxu0 0
        %1313 = vmatpush2.bf16.msra.mxu0 0
        %1314 = vmatprep.subr.bf16.mxu0 0
        %1315 = vmatpush2.bf16.msra.mxu0 0
        %1316 = vmatprep.subr.bf16.mxu0 0
        %1317 = vmatpush2.bf16.msra.mxu0 0
        %1318 = vmatprep.subr.bf16.mxu0 0
        %1319 = vmatpush2.bf16.msra.mxu0 0
        %1320 = vmatprep.subr.bf16.mxu0 0
        %1321 = vmatpush2.bf16.msra.mxu0 0
        %1322 = vmatprep.subr.bf16.mxu0 0
        %1323 = vmatpush2.bf16.msra.mxu0 0
        %1324 = vmatprep.subr.bf16.mxu0 0
        %1325 = vmatpush2.bf16.msra.mxu0 0
        %1326 = vmatprep.subr.bf16.mxu0 0
        %1327 = vmatpush2.bf16.msra.mxu0 0
        %1328 = vmatprep.mubr.bf16.mxu0 0
        %1329 = vmatmul.mubr.bf16.gmra.mxu0 %v1168
        %v1330 = vpop.f32.mrf.mxu0
        %v1331 = vadd.f32 %v1282, %v1330
        %v1332 = vpop.f32.mrf.mxu0
        %v1333 = vpop.f32.mrf.mxu0
        %v1334 = vpop.f32.mrf.mxu0
        %1335 = vdwg.mxu0
        %v1336 = vld [vmem:[%s910] sm:$0x1]
        %v1338 = vlaneseq
        %v1339 = vshrl.u32 %v1338, 7
        %v1340 = vsub.s32 0, %v1339
        %v1341 = vrot.slane %v1336, %v1340
        %v1343 = vpack.c.bf16 %v1205, %v1205
        %v1344 = vpack.c.bf16 %v1268, %v1268
        %v1345 = vpack.c.bf16 %v1331, %v1331
        %vm1346 = vcmask 64512
        %v1348 = vsel %vm1346, %v1343, 0
        %v1351 = vsel %vm1346, %v1344, 0
        %1353 = vmatprep.subr.bf16.mxu0 0
        %1354 = vmatpush1.bf16.xpose.msra.mxu0 0
        %1355 = vmatprep.subr.bf16.mxu0 0
        %1356 = vmatpush1.bf16.xpose.msra.mxu0 0
        %1357 = vmatprep.subr.bf16.mxu0 0
        %1358 = vmatpush1.bf16.xpose.msra.mxu0 0
        %1359 = vmatprep.subr.bf16.mxu0 0
        %1360 = vmatpush1.bf16.xpose.msra.mxu0 0
        %1361 = vmatprep.subr.bf16.mxu0 0
        %1362 = vmatpush1.bf16.xpose.msra.mxu0 0
        %1363 = vmatprep.subr.bf16.mxu0 0
        %1364 = vmatpush1.bf16.xpose.msra.mxu0 0
        %1365 = vmatprep.subr.bf16.mxu0 0
        %1366 = vmatpush1.bf16.xpose.msra.mxu0 0
        %1367 = vmatprep.subr.bf16.mxu0 0
        %1368 = vmatpush1.bf16.xpose.msra.mxu0 %v1351
        %1369 = vmatprep.subr.bf16.mxu0 0
        %1370 = vmatpush2.bf16.xpose.msra.mxu0 0
        %1371 = vmatprep.subr.bf16.mxu0 0
        %1372 = vmatpush2.bf16.xpose.msra.mxu0 0
        %1373 = vmatprep.subr.bf16.mxu0 0
        %1374 = vmatpush2.bf16.xpose.msra.mxu0 0
        %1375 = vmatprep.subr.bf16.mxu0 0
        %1376 = vmatpush2.bf16.xpose.msra.mxu0 0
        %1377 = vmatprep.subr.bf16.mxu0 0
        %1378 = vmatpush2.bf16.xpose.msra.mxu0 0
        %1379 = vmatprep.subr.bf16.mxu0 0
        %1380 = vmatpush2.bf16.xpose.msra.mxu0 0
        %1381 = vmatprep.subr.bf16.mxu0 0
        %1382 = vmatpush2.bf16.xpose.msra.mxu0 0
        %1383 = vmatprep.subr.bf16.mxu0 0
        %1384 = vmatpush2.bf16.xpose.msra.mxu0 0
        %1385 = vmatprep.mubr.bf16.mxu0 0
        %1386 = vmatmul.mubr.bf16.gmra.mxu0 %v1348
        %v1387 = vpop.f32.mrf.mxu0
        %v1388 = vadd.f32 0.0, %v1387
        %v1389 = vpop.f32.mrf.mxu0
        %v1390 = vpop.f32.mrf.mxu0
        %v1391 = vpop.f32.mrf.mxu0
        %1392 = vdwg.mxu0
        %v1393 = vmul.f32 %v1388, 0.35355338
        %v1394 = vadd.f32 %v1393, %v1341
        %v1395 = vsel %vm1346, %v1394, -inf
        %1396 = vmax.xlane.f32.xlu0 %v1395
        %v1397 = vpop.xlane.xlu0 %1396
        %v1398 = vsub.f32 %v1394, %v1397
        %v1399 = vmul.f32 %v1398, 1.442695
        %v1400 = vpow.pop %v1399
        %v1401 = vsel %vm1346, %v1400, 0.0
        %1402 = vadd.xlane.f32.xlu0 %v1401
        %v1403 = vpop.xlane.xlu0 %1402
        %v1404 = vpack.c.bf16 %v1400, %v1400
        %v1406 = vsel %vm1346, %v1404, 0
        %vm1408 = vcmask 1043456
        %v1410 = vsel %vm1408, %v1345, 0
        %1412 = vmatprep.subr.bf16.mxu0 0
        %1413 = vmatpush1.bf16.msra.mxu0 0
        %1414 = vmatprep.subr.bf16.mxu0 0
        %1415 = vmatpush1.bf16.msra.mxu0 0
        %1416 = vmatprep.subr.bf16.mxu0 0
        %1417 = vmatpush1.bf16.msra.mxu0 0
        %1418 = vmatprep.subr.bf16.mxu0 0
        %1419 = vmatpush1.bf16.msra.mxu0 0
        %1420 = vmatprep.subr.bf16.mxu0 0
        %1421 = vmatpush1.bf16.msra.mxu0 0
        %1422 = vmatprep.subr.bf16.mxu0 0
        %1423 = vmatpush1.bf16.msra.mxu0 0
        %1424 = vmatprep.subr.bf16.mxu0 0
        %1425 = vmatpush1.bf16.msra.mxu0 0
        %1426 = vmatprep.subr.bf16.mxu0 0
        %1427 = vmatpush1.bf16.msra.mxu0 %v1410
        %1428 = vmatprep.subr.bf16.mxu0 0
        %1429 = vmatpush2.bf16.msra.mxu0 0
        %1430 = vmatprep.subr.bf16.mxu0 0
        %1431 = vmatpush2.bf16.msra.mxu0 0
        %1432 = vmatprep.subr.bf16.mxu0 0
        %1433 = vmatpush2.bf16.msra.mxu0 0
        %1434 = vmatprep.subr.bf16.mxu0 0
        %1435 = vmatpush2.bf16.msra.mxu0 0
        %1436 = vmatprep.subr.bf16.mxu0 0
        %1437 = vmatpush2.bf16.msra.mxu0 0
        %1438 = vmatprep.subr.bf16.mxu0 0
        %1439 = vmatpush2.bf16.msra.mxu0 0
        %1440 = vmatprep.subr.bf16.mxu0 0
        %1441 = vmatpush2.bf16.msra.mxu0 0
        %1442 = vmatprep.subr.bf16.mxu0 0
        %1443 = vmatpush2.bf16.msra.mxu0 0
        %1444 = vmatprep.mubr.bf16.mxu0 0
        %1445 = vmatmul.mubr.bf16.gmra.mxu0 %v1406
        %v1446 = vpop.f32.mrf.mxu0
        %v1447 = vadd.f32 0.0, %v1446
        %v1448 = vpop.f32.mrf.mxu0
        %v1449 = vpop.f32.mrf.mxu0
        %v1450 = vpop.f32.mrf.mxu0
        %1451 = vdwg.mxu0
        %v1452 = vrcp.pop %v1403
        %v1453 = vmul.f32 %v1447, %v1452
        %1454 = vst.msk [vmem:[#allocation3] sm:$0xff] %vm1346, %v1453
        %1456 = vrot.lane.b32.xlu0 %v1343, 120
        %v1457 = vpop.permute.xlu0 %1456
        %1459 = vrot.lane.b32.xlu0 %v1344, 120
        %v1460 = vpop.permute.xlu0 %1459
        %v1462 = vsel %vm1346, %v1457, 0
        %v1465 = vsel %vm1346, %v1460, 0
        %1467 = vmatprep.subr.bf16.mxu0 0
        %1468 = vmatpush1.bf16.xpose.msra.mxu0 0
        %1469 = vmatprep.subr.bf16.mxu0 0
        %1470 = vmatpush1.bf16.xpose.msra.mxu0 0
        %1471 = vmatprep.subr.bf16.mxu0 0
        %1472 = vmatpush1.bf16.xpose.msra.mxu0 0
        %1473 = vmatprep.subr.bf16.mxu0 0
        %1474 = vmatpush1.bf16.xpose.msra.mxu0 0
        %1475 = vmatprep.subr.bf16.mxu0 0
        %1476 = vmatpush1.bf16.xpose.msra.mxu0 0
        %1477 = vmatprep.subr.bf16.mxu0 0
        %1478 = vmatpush1.bf16.xpose.msra.mxu0 0
        %1479 = vmatprep.subr.bf16.mxu0 0
        %1480 = vmatpush1.bf16.xpose.msra.mxu0 0
        %1481 = vmatprep.subr.bf16.mxu0 0
        %1482 = vmatpush1.bf16.xpose.msra.mxu0 %v1465
        %1483 = vmatprep.subr.bf16.mxu0 0
        %1484 = vmatpush2.bf16.xpose.msra.mxu0 0
        %1485 = vmatprep.subr.bf16.mxu0 0
        %1486 = vmatpush2.bf16.xpose.msra.mxu0 0
        %1487 = vmatprep.subr.bf16.mxu0 0
        %1488 = vmatpush2.bf16.xpose.msra.mxu0 0
        %1489 = vmatprep.subr.bf16.mxu0 0
        %1490 = vmatpush2.bf16.xpose.msra.mxu0 0
        %1491 = vmatprep.subr.bf16.mxu0 0
        %1492 = vmatpush2.bf16.xpose.msra.mxu0 0
        %1493 = vmatprep.subr.bf16.mxu0 0
        %1494 = vmatpush2.bf16.xpose.msra.mxu0 0
        %1495 = vmatprep.subr.bf16.mxu0 0
        %1496 = vmatpush2.bf16.xpose.msra.mxu0 0
        %1497 = vmatprep.subr.bf16.mxu0 0
        %1498 = vmatpush2.bf16.xpose.msra.mxu0 0
        %1499 = vmatprep.mubr.bf16.mxu0 0
        %1500 = vmatmul.mubr.bf16.gmra.mxu0 %v1462
        %v1501 = vpop.f32.mrf.mxu0
        %v1502 = vadd.f32 0.0, %v1501
        %v1503 = vpop.f32.mrf.mxu0
        %v1504 = vpop.f32.mrf.mxu0
        %v1505 = vpop.f32.mrf.mxu0
        %1506 = vdwg.mxu0
        %v1507 = vmul.f32 %v1502, 0.35355338
        %v1508 = vadd.f32 %v1507, %v1341
        %v1509 = vsel %vm1346, %v1508, -inf
        %1510 = vmax.xlane.f32.xlu0 %v1509
        %v1511 = vpop.xlane.xlu0 %1510
        %v1512 = vsub.f32 %v1508, %v1511
        %v1513 = vmul.f32 %v1512, 1.442695
        %v1514 = vpow.pop %v1513
        %v1515 = vsel %vm1346, %v1514, 0.0
        %1516 = vadd.xlane.f32.xlu0 %v1515
        %v1517 = vpop.xlane.xlu0 %1516
        %v1518 = vpack.c.bf16 %v1514, %v1514
        %1520 = vrot.lane.b32.xlu0 %v1345, 120
        %v1521 = vpop.permute.xlu0 %1520
        %v1523 = vsel %vm1346, %v1518, 0
        %v1526 = vsel %vm1408, %v1521, 0
        %1528 = vmatprep.subr.bf16.mxu0 0
        %1529 = vmatpush1.bf16.msra.mxu0 0
        %1530 = vmatprep.subr.bf16.mxu0 0
        %1531 = vmatpush1.bf16.msra.mxu0 0
        %1532 = vmatprep.subr.bf16.mxu0 0
        %1533 = vmatpush1.bf16.msra.mxu0 0
        %1534 = vmatprep.subr.bf16.mxu0 0
        %1535 = vmatpush1.bf16.msra.mxu0 0
        %1536 = vmatprep.subr.bf16.mxu0 0
        %1537 = vmatpush1.bf16.msra.mxu0 0
        %1538 = vmatprep.subr.bf16.mxu0 0
        %1539 = vmatpush1.bf16.msra.mxu0 0
        %1540 = vmatprep.subr.bf16.mxu0 0
        %1541 = vmatpush1.bf16.msra.mxu0 0
        %1542 = vmatprep.subr.bf16.mxu0 0
        %1543 = vmatpush1.bf16.msra.mxu0 %v1526
        %1544 = vmatprep.subr.bf16.mxu0 0
        %1545 = vmatpush2.bf16.msra.mxu0 0
        %1546 = vmatprep.subr.bf16.mxu0 0
        %1547 = vmatpush2.bf16.msra.mxu0 0
        %1548 = vmatprep.subr.bf16.mxu0 0
        %1549 = vmatpush2.bf16.msra.mxu0 0
        %1550 = vmatprep.subr.bf16.mxu0 0
        %1551 = vmatpush2.bf16.msra.mxu0 0
        %1552 = vmatprep.subr.bf16.mxu0 0
        %1553 = vmatpush2.bf16.msra.mxu0 0
        %1554 = vmatprep.subr.bf16.mxu0 0
        %1555 = vmatpush2.bf16.msra.mxu0 0
        %1556 = vmatprep.subr.bf16.mxu0 0
        %1557 = vmatpush2.bf16.msra.mxu0 0
        %1558 = vmatprep.subr.bf16.mxu0 0
        %1559 = vmatpush2.bf16.msra.mxu0 0
        %1560 = vmatprep.mubr.bf16.mxu0 0
        %1561 = vmatmul.mubr.bf16.gmra.mxu0 %v1523
        %v1562 = vpop.f32.mrf.mxu0
        %v1563 = vadd.f32 0.0, %v1562
        %v1564 = vpop.f32.mrf.mxu0
        %v1565 = vpop.f32.mrf.mxu0
        %v1566 = vpop.f32.mrf.mxu0
        %1567 = vdwg.mxu0
        %v1568 = vrcp.pop %v1517
        %v1569 = vmul.f32 %v1563, %v1568
        %1571 = vrot.lane.b32.xlu0 %v1569, 8
        %v1572 = vpop.permute.xlu0 %1571
        %vm1574 = vcmask 130112
        %1575 = vst.msk [vmem:[#allocation3] sm:$0xff] %vm1574, %v1572
        %1576 = vrot.lane.b32.xlu0 %v1343, 112
        %v1577 = vpop.permute.xlu0 %1576
        %1578 = vrot.lane.b32.xlu0 %v1344, 112
        %v1579 = vpop.permute.xlu0 %1578
        %v1581 = vsel %vm1346, %v1577, 0
        %v1584 = vsel %vm1346, %v1579, 0
        %1586 = vmatprep.subr.bf16.mxu0 0
        %1587 = vmatpush1.bf16.xpose.msra.mxu0 0
        %1588 = vmatprep.subr.bf16.mxu0 0
        %1589 = vmatpush1.bf16.xpose.msra.mxu0 0
        %1590 = vmatprep.subr.bf16.mxu0 0
        %1591 = vmatpush1.bf16.xpose.msra.mxu0 0
        %1592 = vmatprep.subr.bf16.mxu0 0
        %1593 = vmatpush1.bf16.xpose.msra.mxu0 0
        %1594 = vmatprep.subr.bf16.mxu0 0
        %1595 = vmatpush1.bf16.xpose.msra.mxu0 0
        %1596 = vmatprep.subr.bf16.mxu0 0
        %1597 = vmatpush1.bf16.xpose.msra.mxu0 0
        %1598 = vmatprep.subr.bf16.mxu0 0
        %1599 = vmatpush1.bf16.xpose.msra.mxu0 0
        %1600 = vmatprep.subr.bf16.mxu0 0
        %1601 = vmatpush1.bf16.xpose.msra.mxu0 %v1584
        %1602 = vmatprep.subr.bf16.mxu0 0
        %1603 = vmatpush2.bf16.xpose.msra.mxu0 0
        %1604 = vmatprep.subr.bf16.mxu0 0
        %1605 = vmatpush2.bf16.xpose.msra.mxu0 0
        %1606 = vmatprep.subr.bf16.mxu0 0
        %1607 = vmatpush2.bf16.xpose.msra.mxu0 0
        %1608 = vmatprep.subr.bf16.mxu0 0
        %1609 = vmatpush2.bf16.xpose.msra.mxu0 0
        %1610 = vmatprep.subr.bf16.mxu0 0
        %1611 = vmatpush2.bf16.xpose.msra.mxu0 0
        %1612 = vmatprep.subr.bf16.mxu0 0
        %1613 = vmatpush2.bf16.xpose.msra.mxu0 0
        %1614 = vmatprep.subr.bf16.mxu0 0
        %1615 = vmatpush2.bf16.xpose.msra.mxu0 0
        %1616 = vmatprep.subr.bf16.mxu0 0
        %1617 = vmatpush2.bf16.xpose.msra.mxu0 0
        %1618 = vmatprep.mubr.bf16.mxu0 0
        %1619 = vmatmul.mubr.bf16.gmra.mxu0 %v1581
        %v1620 = vpop.f32.mrf.mxu0
        %v1621 = vadd.f32 0.0, %v1620
        %v1622 = vpop.f32.mrf.mxu0
        %v1623 = vpop.f32.mrf.mxu0
        %v1624 = vpop.f32.mrf.mxu0
        %1625 = vdwg.mxu0
        %v1626 = vmul.f32 %v1621, 0.35355338
        %v1627 = vadd.f32 %v1626, %v1341
        %v1628 = vsel %vm1346, %v1627, -inf
        %1629 = vmax.xlane.f32.xlu0 %v1628
        %v1630 = vpop.xlane.xlu0 %1629
        %v1631 = vsub.f32 %v1627, %v1630
        %v1632 = vmul.f32 %v1631, 1.442695
        %v1633 = vpow.pop %v1632
        %v1634 = vsel %vm1346, %v1633, 0.0
        %1635 = vadd.xlane.f32.xlu0 %v1634
        %v1636 = vpop.xlane.xlu0 %1635
        %v1637 = vpack.c.bf16 %v1633, %v1633
        %1638 = vrot.lane.b32.xlu0 %v1345, 112
        %v1639 = vpop.permute.xlu0 %1638
        %v1641 = vsel %vm1346, %v1637, 0
        %v1644 = vsel %vm1408, %v1639, 0
        %1646 = vmatprep.subr.bf16.mxu0 0
        %1647 = vmatpush1.bf16.msra.mxu0 0
        %1648 = vmatprep.subr.bf16.mxu0 0
        %1649 = vmatpush1.bf16.msra.mxu0 0
        %1650 = vmatprep.subr.bf16.mxu0 0
        %1651 = vmatpush1.bf16.msra.mxu0 0
        %1652 = vmatprep.subr.bf16.mxu0 0
        %1653 = vmatpush1.bf16.msra.mxu0 0
        %1654 = vmatprep.subr.bf16.mxu0 0
        %1655 = vmatpush1.bf16.msra.mxu0 0
        %1656 = vmatprep.subr.bf16.mxu0 0
        %1657 = vmatpush1.bf16.msra.mxu0 0
        %1658 = vmatprep.subr.bf16.mxu0 0
        %1659 = vmatpush1.bf16.msra.mxu0 0
        %1660 = vmatprep.subr.bf16.mxu0 0
        %1661 = vmatpush1.bf16.msra.mxu0 %v1644
        %1662 = vmatprep.subr.bf16.mxu0 0
        %1663 = vmatpush2.bf16.msra.mxu0 0
        %1664 = vmatprep.subr.bf16.mxu0 0
        %1665 = vmatpush2.bf16.msra.mxu0 0
        %1666 = vmatprep.subr.bf16.mxu0 0
        %1667 = vmatpush2.bf16.msra.mxu0 0
        %1668 = vmatprep.subr.bf16.mxu0 0
        %1669 = vmatpush2.bf16.msra.mxu0 0
        %1670 = vmatprep.subr.bf16.mxu0 0
        %1671 = vmatpush2.bf16.msra.mxu0 0
        %1672 = vmatprep.subr.bf16.mxu0 0
        %1673 = vmatpush2.bf16.msra.mxu0 0
        %1674 = vmatprep.subr.bf16.mxu0 0
        %1675 = vmatpush2.bf16.msra.mxu0 0
        %1676 = vmatprep.subr.bf16.mxu0 0
        %1677 = vmatpush2.bf16.msra.mxu0 0
        %1678 = vmatprep.mubr.bf16.mxu0 0
        %1679 = vmatmul.mubr.bf16.gmra.mxu0 %v1641
        %v1680 = vpop.f32.mrf.mxu0
        %v1681 = vadd.f32 0.0, %v1680
        %v1682 = vpop.f32.mrf.mxu0
        %v1683 = vpop.f32.mrf.mxu0
        %v1684 = vpop.f32.mrf.mxu0
        %1685 = vdwg.mxu0
        %v1686 = vrcp.pop %v1636
        %v1687 = vmul.f32 %v1681, %v1686
        %1689 = vrot.lane.b32.xlu0 %v1687, 16
        %v1690 = vpop.permute.xlu0 %1689
        %vm1692 = vcmask 195712
        %1693 = vst.msk [vmem:[#allocation3] sm:$0xff] %vm1692, %v1690
        %1694 = vrot.lane.b32.xlu0 %v1343, 104
        %v1695 = vpop.permute.xlu0 %1694
        %1696 = vrot.lane.b32.xlu0 %v1344, 104
        %v1697 = vpop.permute.xlu0 %1696
        %v1699 = vsel %vm1346, %v1695, 0
        %v1702 = vsel %vm1346, %v1697, 0
        %1704 = vmatprep.subr.bf16.mxu0 0
        %1705 = vmatpush1.bf16.xpose.msra.mxu0 0
        %1706 = vmatprep.subr.bf16.mxu0 0
        %1707 = vmatpush1.bf16.xpose.msra.mxu0 0
        %1708 = vmatprep.subr.bf16.mxu0 0
        %1709 = vmatpush1.bf16.xpose.msra.mxu0 0
        %1710 = vmatprep.subr.bf16.mxu0 0
        %1711 = vmatpush1.bf16.xpose.msra.mxu0 0
        %1712 = vmatprep.subr.bf16.mxu0 0
        %1713 = vmatpush1.bf16.xpose.msra.mxu0 0
        %1714 = vmatprep.subr.bf16.mxu0 0
        %1715 = vmatpush1.bf16.xpose.msra.mxu0 0
        %1716 = vmatprep.subr.bf16.mxu0 0
        %1717 = vmatpush1.bf16.xpose.msra.mxu0 0
        %1718 = vmatprep.subr.bf16.mxu0 0
        %1719 = vmatpush1.bf16.xpose.msra.mxu0 %v1702
        %1720 = vmatprep.subr.bf16.mxu0 0
        %1721 = vmatpush2.bf16.xpose.msra.mxu0 0
        %1722 = vmatprep.subr.bf16.mxu0 0
        %1723 = vmatpush2.bf16.xpose.msra.mxu0 0
        %1724 = vmatprep.subr.bf16.mxu0 0
        %1725 = vmatpush2.bf16.xpose.msra.mxu0 0
        %1726 = vmatprep.subr.bf16.mxu0 0
        %1727 = vmatpush2.bf16.xpose.msra.mxu0 0
        %1728 = vmatprep.subr.bf16.mxu0 0
        %1729 = vmatpush2.bf16.xpose.msra.mxu0 0
        %1730 = vmatprep.subr.bf16.mxu0 0
        %1731 = vmatpush2.bf16.xpose.msra.mxu0 0
        %1732 = vmatprep.subr.bf16.mxu0 0
        %1733 = vmatpush2.bf16.xpose.msra.mxu0 0
        %1734 = vmatprep.subr.bf16.mxu0 0
        %1735 = vmatpush2.bf16.xpose.msra.mxu0 0
        %1736 = vmatprep.mubr.bf16.mxu0 0
        %1737 = vmatmul.mubr.bf16.gmra.mxu0 %v1699
        %v1738 = vpop.f32.mrf.mxu0
        %v1739 = vadd.f32 0.0, %v1738
        %v1740 = vpop.f32.mrf.mxu0
        %v1741 = vpop.f32.mrf.mxu0
        %v1742 = vpop.f32.mrf.mxu0
        %1743 = vdwg.mxu0
        %v1744 = vmul.f32 %v1739, 0.35355338
        %v1745 = vadd.f32 %v1744, %v1341
        %v1746 = vsel %vm1346, %v1745, -inf
        %1747 = vmax.xlane.f32.xlu0 %v1746
        %v1748 = vpop.xlane.xlu0 %1747
        %v1749 = vsub.f32 %v1745, %v1748
        %v1750 = vmul.f32 %v1749, 1.442695
        %v1751 = vpow.pop %v1750
        %v1752 = vsel %vm1346, %v1751, 0.0
        %1753 = vadd.xlane.f32.xlu0 %v1752
        %v1754 = vpop.xlane.xlu0 %1753
        %v1755 = vpack.c.bf16 %v1751, %v1751
        %1756 = vrot.lane.b32.xlu0 %v1345, 104
        %v1757 = vpop.permute.xlu0 %1756
        %v1759 = vsel %vm1346, %v1755, 0
        %v1762 = vsel %vm1408, %v1757, 0
        %1764 = vmatprep.subr.bf16.mxu0 0
        %1765 = vmatpush1.bf16.msra.mxu0 0
        %1766 = vmatprep.subr.bf16.mxu0 0
        %1767 = vmatpush1.bf16.msra.mxu0 0
        %1768 = vmatprep.subr.bf16.mxu0 0
        %1769 = vmatpush1.bf16.msra.mxu0 0
        %1770 = vmatprep.subr.bf16.mxu0 0
        %1771 = vmatpush1.bf16.msra.mxu0 0
        %1772 = vmatprep.subr.bf16.mxu0 0
        %1773 = vmatpush1.bf16.msra.mxu0 0
        %1774 = vmatprep.subr.bf16.mxu0 0
        %1775 = vmatpush1.bf16.msra.mxu0 0
        %1776 = vmatprep.subr.bf16.mxu0 0
        %1777 = vmatpush1.bf16.msra.mxu0 0
        %1778 = vmatprep.subr.bf16.mxu0 0
        %1779 = vmatpush1.bf16.msra.mxu0 %v1762
        %1780 = vmatprep.subr.bf16.mxu0 0
        %1781 = vmatpush2.bf16.msra.mxu0 0
        %1782 = vmatprep.subr.bf16.mxu0 0
        %1783 = vmatpush2.bf16.msra.mxu0 0
        %1784 = vmatprep.subr.bf16.mxu0 0
        %1785 = vmatpush2.bf16.msra.mxu0 0
        %1786 = vmatprep.subr.bf16.mxu0 0
        %1787 = vmatpush2.bf16.msra.mxu0 0
        %1788 = vmatprep.subr.bf16.mxu0 0
        %1789 = vmatpush2.bf16.msra.mxu0 0
        %1790 = vmatprep.subr.bf16.mxu0 0
        %1791 = vmatpush2.bf16.msra.mxu0 0
        %1792 = vmatprep.subr.bf16.mxu0 0
        %1793 = vmatpush2.bf16.msra.mxu0 0
        %1794 = vmatprep.subr.bf16.mxu0 0
        %1795 = vmatpush2.bf16.msra.mxu0 0
        %1796 = vmatprep.mubr.bf16.mxu0 0
        %1797 = vmatmul.mubr.bf16.gmra.mxu0 %v1759
        %v1798 = vpop.f32.mrf.mxu0
        %v1799 = vadd.f32 0.0, %v1798
        %v1800 = vpop.f32.mrf.mxu0
        %v1801 = vpop.f32.mrf.mxu0
        %v1802 = vpop.f32.mrf.mxu0
        %1803 = vdwg.mxu0
        %v1804 = vrcp.pop %v1754
        %v1805 = vmul.f32 %v1799, %v1804
        %1807 = vrot.lane.b32.xlu0 %v1805, 24
        %v1808 = vpop.permute.xlu0 %1807
        %vm1810 = vcmask 261312
        %1811 = vst.msk [vmem:[#allocation3] sm:$0xff] %vm1810, %v1808
        %v1812 = vld [vmem:[#allocation3] sm:$0xff]
        %v1813 = vpack.c.bf16 %v1812, %v1812
        %v1814 = vld [vmem:[%s943] sm:$0xf]
        %v1815 = vld [vmem:[%s943 + $0x4] sm:$0xf]
        %v1816 = vld [vmem:[%s943 + $0x8] sm:$0xf]
        %v1817 = vld [vmem:[%s943 + $0xc] sm:$0xf]
        %v1818 = vld [vmem:[%s951] sm:$0x1]
        %v1820 = vlaneseq
        %v1821 = vshrl.u32 %v1820, 7
        %v1822 = vsub.s32 0, %v1821
        %v1823 = vrot.slane %v1818, %v1822
        %v1829 = vunpack.c.l.b16 %v1814
        %v1830 = vunpack.c.l.b16 %v1815
        %v1831 = vunpack.c.l.b16 %v1816
        %v1832 = vunpack.c.l.b16 %v1817
        %v1833 = vpack.c.b16 %v1830, %v1829
        %v1834 = vpack.c.b16 %v1832, %v1831
        %v1838 = vsel %vm1166, %v1813, 0
        %1840 = vmatprep.subr.bf16.mxu0 0
        %1841 = vmatpush1.bf16.msra.mxu0 0
        %1842 = vmatprep.subr.bf16.mxu0 0
        %1843 = vmatpush1.bf16.msra.mxu0 0
        %1844 = vmatprep.subr.bf16.mxu0 0
        %1845 = vmatpush1.bf16.msra.mxu0 0
        %1846 = vmatprep.subr.bf16.mxu0 0
        %1847 = vmatpush1.bf16.msra.mxu0 0
        %1848 = vmatprep.subr.bf16.mxu0 0
        %1849 = vmatpush1.bf16.msra.mxu0 0
        %1850 = vmatprep.subr.bf16.mxu0 0
        %1851 = vmatpush1.bf16.msra.mxu0 0
        %1852 = vmatprep.subr.bf16.mxu0 0
        %1853 = vmatpush1.bf16.msra.mxu0 %v1834
        %1854 = vmatprep.subr.bf16.mxu0 0
        %1855 = vmatpush1.bf16.msra.mxu0 %v1833
        %1856 = vmatprep.subr.bf16.mxu0 0
        %1857 = vmatpush2.bf16.msra.mxu0 0
        %1858 = vmatprep.subr.bf16.mxu0 0
        %1859 = vmatpush2.bf16.msra.mxu0 0
        %1860 = vmatprep.subr.bf16.mxu0 0
        %1861 = vmatpush2.bf16.msra.mxu0 0
        %1862 = vmatprep.subr.bf16.mxu0 0
        %1863 = vmatpush2.bf16.msra.mxu0 0
        %1864 = vmatprep.subr.bf16.mxu0 0
        %1865 = vmatpush2.bf16.msra.mxu0 0
        %1866 = vmatprep.subr.bf16.mxu0 0
        %1867 = vmatpush2.bf16.msra.mxu0 0
        %1868 = vmatprep.subr.bf16.mxu0 0
        %1869 = vmatpush2.bf16.msra.mxu0 0
        %1870 = vmatprep.subr.bf16.mxu0 0
        %1871 = vmatpush2.bf16.msra.mxu0 0
        %1872 = vmatprep.mubr.bf16.mxu0 0
        %1873 = vmatmul.mubr.bf16.gmra.mxu0 %v1838
        %v1874 = vpop.f32.mrf.mxu0
        %v1875 = vadd.f32 %v1823, %v1874
        %v1876 = vpop.f32.mrf.mxu0
        %v1877 = vpop.f32.mrf.mxu0
        %v1878 = vpop.f32.mrf.mxu0
        %1879 = vdwg.mxu0
        %v1880 = vadd.f32 %v1141, %v1875
        %v1881 = vld [vmem:[%s1115] sm:$0x1]
        %v1882 = vld [vmem:[%s1118] sm:$0x1]
        %v1883 = vsel %vm1166, %v1880, 0.0
        %1884 = vadd.xlane.f32.xlu0 %v1883
        %v1885 = vpop.xlane.xlu0 %1884
        %v1886 = vrcp.pop 32.0
        %v1887 = vmul.f32 %v1885, %v1886
        %v1888 = vmul.f32 %v1880, %v1880
        %v1889 = vsel %vm1166, %v1888, 0.0
        %1890 = vadd.xlane.f32.xlu0 %v1889
        %v1891 = vpop.xlane.xlu0 %1890
        %v1892 = vmul.f32 %v1891, %v1886
        %v1893 = vmul.f32 %v1887, %v1887
        %v1894 = vsub.f32 %v1892, %v1893
        %v1895 = vsub.f32 %v1880, %v1887
        %v1896 = vadd.f32 %v1894, 1e-05
        %v1897 = vrsqrt.pop %v1896
        %v1898 = vmul.f32 %v1895, %v1897
        %v1900 = vlaneseq
        %v1901 = vshrl.u32 %v1900, 7
        %v1902 = vsub.s32 0, %v1901
        %v1903 = vrot.slane %v1881, %v1902
        %v1905 = vmul.f32 %v1898, %v1903
        %v1907 = vlaneseq
        %v1908 = vshrl.u32 %v1907, 7
        %v1909 = vsub.s32 0, %v1908
        %v1910 = vrot.slane %v1882, %v1909
        %v1912 = vadd.f32 %v1905, %v1910
        %v1913 = vpack.c.bf16 %v1912, %v1912
        %v1914 = vld [vmem:[%s968] sm:$0xf]
        %v1915 = vld [vmem:[%s968 + $0x4] sm:$0xf]
        %v1916 = vld [vmem:[%s968 + $0x8] sm:$0xf]
        %v1917 = vld [vmem:[%s968 + $0xc] sm:$0xf]
        %v1918 = vld [vmem:[%s1124] sm:$0x1]
        %v1920 = vlaneseq
        %v1921 = vshrl.u32 %v1920, 7
        %v1922 = vsub.s32 0, %v1921
        %v1923 = vrot.slane %v1918, %v1922
        %v1929 = vunpack.c.l.b16 %v1914
        %v1930 = vunpack.c.l.b16 %v1915
        %v1931 = vunpack.c.l.b16 %v1916
        %v1932 = vunpack.c.l.b16 %v1917
        %v1933 = vpack.c.b16 %v1930, %v1929
        %v1934 = vpack.c.b16 %v1932, %v1931
        %v1938 = vsel %vm1166, %v1913, 0
        %1940 = vmatprep.subr.bf16.mxu0 0
        %1941 = vmatpush1.bf16.msra.mxu0 0
        %1942 = vmatprep.subr.bf16.mxu0 0
        %1943 = vmatpush1.bf16.msra.mxu0 0
        %1944 = vmatprep.subr.bf16.mxu0 0
        %1945 = vmatpush1.bf16.msra.mxu0 0
        %1946 = vmatprep.subr.bf16.mxu0 0
        %1947 = vmatpush1.bf16.msra.mxu0 0
        %1948 = vmatprep.subr.bf16.mxu0 0
        %1949 = vmatpush1.bf16.msra.mxu0 0
        %1950 = vmatprep.subr.bf16.mxu0 0
        %1951 = vmatpush1.bf16.msra.mxu0 0
        %1952 = vmatprep.subr.bf16.mxu0 0
        %1953 = vmatpush1.bf16.msra.mxu0 %v1934
        %1954 = vmatprep.subr.bf16.mxu0 0
        %1955 = vmatpush1.bf16.msra.mxu0 %v1933
        %1956 = vmatprep.subr.bf16.mxu0 0
        %1957 = vmatpush2.bf16.msra.mxu0 0
        %1958 = vmatprep.subr.bf16.mxu0 0
        %1959 = vmatpush2.bf16.msra.mxu0 0
        %1960 = vmatprep.subr.bf16.mxu0 0
        %1961 = vmatpush2.bf16.msra.mxu0 0
        %1962 = vmatprep.subr.bf16.mxu0 0
        %1963 = vmatpush2.bf16.msra.mxu0 0
        %1964 = vmatprep.subr.bf16.mxu0 0
        %1965 = vmatpush2.bf16.msra.mxu0 0
        %1966 = vmatprep.subr.bf16.mxu0 0
        %1967 = vmatpush2.bf16.msra.mxu0 0
        %1968 = vmatprep.subr.bf16.mxu0 0
        %1969 = vmatpush2.bf16.msra.mxu0 0
        %1970 = vmatprep.subr.bf16.mxu0 0
        %1971 = vmatpush2.bf16.msra.mxu0 0
        %1972 = vmatprep.mubr.bf16.mxu0 0
        %1973 = vmatmul.mubr.bf16.gmra.mxu0 %v1938
        %v1974 = vpop.f32.mrf.mxu0
        %v1975 = vadd.f32 %v1923, %v1974
        %v1976 = vpop.f32.mrf.mxu0
        %v1977 = vpop.f32.mrf.mxu0
        %v1978 = vpop.f32.mrf.mxu0
        %1979 = vdwg.mxu0
        %v1980 = vmax.f32 %v1975, 0.0
        %v1981 = vpack.c.bf16 %v1980, %v1980
        %v1982 = vld [vmem:[%s1129] sm:$0xf]
        %v1983 = vld [vmem:[%s1129 + $0x4] sm:$0xf]
        %v1984 = vld [vmem:[%s1129 + $0x8] sm:$0xf]
        %v1985 = vld [vmem:[%s1129 + $0xc] sm:$0xf]
        %v1986 = vld [vmem:[%s1129 + $0x10] sm:$0xf]
        %v1987 = vld [vmem:[%s1129 + $0x14] sm:$0xf]
        %v1988 = vld [vmem:[%s1129 + $0x18] sm:$0xf]
        %v1989 = vld [vmem:[%s1129 + $0x1c] sm:$0xf]
        %v1990 = vld [vmem:[%s1132] sm:$0x1]
        %v1992 = vlaneseq
        %v1993 = vshrl.u32 %v1992, 7
        %v1994 = vsub.s32 0, %v1993
        %v1995 = vrot.slane %v1990, %v1994
        %v2005 = vunpack.c.l.b16 %v1982
        %v2006 = vunpack.c.l.b16 %v1983
        %v2007 = vunpack.c.l.b16 %v1984
        %v2008 = vunpack.c.l.b16 %v1985
        %v2009 = vunpack.c.l.b16 %v1986
        %v2010 = vunpack.c.l.b16 %v1987
        %v2011 = vunpack.c.l.b16 %v1988
        %v2012 = vunpack.c.l.b16 %v1989
        %v2013 = vpack.c.b16 %v2006, %v2005
        %v2014 = vpack.c.b16 %v2008, %v2007
        %v2015 = vpack.c.b16 %v2010, %v2009
        %v2016 = vpack.c.b16 %v2012, %v2011
        %vm2021 = vcmask 523264
        %v2023 = vsel %vm2021, %v1981, 0
        %2025 = vmatprep.subr.bf16.mxu0 0
        %2026 = vmatpush1.bf16.msra.mxu0 0
        %2027 = vmatprep.subr.bf16.mxu0 0
        %2028 = vmatpush1.bf16.msra.mxu0 0
        %2029 = vmatprep.subr.bf16.mxu0 0
        %2030 = vmatpush1.bf16.msra.mxu0 0
        %2031 = vmatprep.subr.bf16.mxu0 0
        %2032 = vmatpush1.bf16.msra.mxu0 0
        %2033 = vmatprep.subr.bf16.mxu0 0
        %2034 = vmatpush1.bf16.msra.mxu0 %v2016
        %2035 = vmatprep.subr.bf16.mxu0 0
        %2036 = vmatpush1.bf16.msra.mxu0 %v2015
        %2037 = vmatprep.subr.bf16.mxu0 0
        %2038 = vmatpush1.bf16.msra.mxu0 %v2014
        %2039 = vmatprep.subr.bf16.mxu0 0
        %2040 = vmatpush1.bf16.msra.mxu0 %v2013
        %2041 = vmatprep.subr.bf16.mxu0 0
        %2042 = vmatpush2.bf16.msra.mxu0 0
        %2043 = vmatprep.subr.bf16.mxu0 0
        %2044 = vmatpush2.bf16.msra.mxu0 0
        %2045 = vmatprep.subr.bf16.mxu0 0
        %2046 = vmatpush2.bf16.msra.mxu0 0
        %2047 = vmatprep.subr.bf16.mxu0 0
        %2048 = vmatpush2.bf16.msra.mxu0 0
        %2049 = vmatprep.subr.bf16.mxu0 0
        %2050 = vmatpush2.bf16.msra.mxu0 0
        %2051 = vmatprep.subr.bf16.mxu0 0
        %2052 = vmatpush2.bf16.msra.mxu0 0
        %2053 = vmatprep.subr.bf16.mxu0 0
        %2054 = vmatpush2.bf16.msra.mxu0 0
        %2055 = vmatprep.subr.bf16.mxu0 0
        %2056 = vmatpush2.bf16.msra.mxu0 0
        %2057 = vmatprep.mubr.bf16.mxu0 0
        %2058 = vmatmul.mubr.bf16.gmra.mxu0 %v2023
        %v2059 = vpop.f32.mrf.mxu0
        %v2060 = vadd.f32 %v1995, %v2059
        %v2061 = vpop.f32.mrf.mxu0
        %v2062 = vpop.f32.mrf.mxu0
        %v2063 = vpop.f32.mrf.mxu0
        %2064 = vdwg.mxu0
        %v2065 = vadd.f32 %v1912, %v2060
        %v2066 = vld [vmem:[%s959] sm:$0x1]
        %v2067 = vld [vmem:[%s1121] sm:$0x1]
        %v2068 = vsel %vm1166, %v2065, 0.0
        %2069 = vadd.xlane.f32.xlu0 %v2068
        %v2070 = vpop.xlane.xlu0 %2069
        %v2071 = vmul.f32 %v2070, %v1886
        %v2072 = vmul.f32 %v2065, %v2065
        %v2073 = vsel %vm1166, %v2072, 0.0
        %2074 = vadd.xlane.f32.xlu0 %v2073
        %v2075 = vpop.xlane.xlu0 %2074
        %v2076 = vmul.f32 %v2075, %v1886
        %v2077 = vmul.f32 %v2071, %v2071
        %v2078 = vsub.f32 %v2076, %v2077
        %v2079 = vsub.f32 %v2065, %v2071
        %v2080 = vadd.f32 %v2078, 1e-05
        %v2081 = vrsqrt.pop %v2080
        %v2082 = vmul.f32 %v2079, %v2081
        %v2084 = vlaneseq
        %v2085 = vshrl.u32 %v2084, 7
        %v2086 = vsub.s32 0, %v2085
        %v2087 = vrot.slane %v2066, %v2086
        %v2089 = vmul.f32 %v2082, %v2087
        %v2091 = vlaneseq
        %v2092 = vshrl.u32 %v2091, 7
        %v2093 = vsub.s32 0, %v2092
        %v2094 = vrot.slane %v2067, %v2093
        %v2096 = vadd.f32 %v2089, %v2094
        %2097 = vst.msk [vmem:[#allocation2] sm:$0xff] %vm1166, %v2096
        %p2098 = scmp.eq.s32.totalorder %s56, 1
        // Predicated region
        $region149: #{tpu_custom_call.1} parent=107 // pred_check
          %p2099 = pneg %p2098
        $region150: #{tpu_custom_call.1} parent=107 // pred_check_branch
          %2101 = sbr.rel (%p2099) target = $region152
        $region151: #{tpu_custom_call.1} parent=107 // pred_region
          %v2102 = vld [vmem:[%s18] sm:$0x1]
          %v2103 = vld [vmem:[%s19] sm:$0x1]
          %v2104 = vsel %vm1166, %v2096, 0.0
          %2105 = vadd.xlane.f32.xlu0 %v2104
          %v2106 = vpop.xlane.xlu0 %2105
          %v2107 = vmul.f32 %v2106, %v1886
          %v2108 = vmul.f32 %v2096, %v2096
          %v2109 = vsel %vm1166, %v2108, 0.0
          %2110 = vadd.xlane.f32.xlu0 %v2109
          %v2111 = vpop.xlane.xlu0 %2110
          %v2112 = vmul.f32 %v2111, %v1886
          %v2113 = vmul.f32 %v2107, %v2107
          %v2114 = vsub.f32 %v2112, %v2113
          %v2115 = vsub.f32 %v2096, %v2107
          %v2116 = vadd.f32 %v2114, 1e-05
          %v2117 = vrsqrt.pop %v2116
          %v2118 = vmul.f32 %v2115, %v2117
          %v2120 = vlaneseq
          %v2121 = vshrl.u32 %v2120, 7
          %v2122 = vsub.s32 0, %v2121
          %v2123 = vrot.slane %v2102, %v2122
          %v2125 = vmul.f32 %v2118, %v2123
          %v2127 = vlaneseq
          %v2128 = vshrl.u32 %v2127, 7
          %v2129 = vsub.s32 0, %v2128
          %v2130 = vrot.slane %v2103, %v2129
          %v2132 = vadd.f32 %v2125, %v2130
          %v2133 = vpack.c.bf16 %v2132, %v2132
          %v2134 = vld [vmem:[%s20] sm:$0xf]
          %v2135 = vld [vmem:[%s20 + $0x4] sm:$0xf]
          %v2136 = vld [vmem:[%s20 + $0x8] sm:$0xf]
          %v2137 = vld [vmem:[%s20 + $0xc] sm:$0xf]
          %v2138 = vld [vmem:[%s21] sm:$0x1]
          %v2140 = vlaneseq
          %v2141 = vshrl.u32 %v2140, 7
          %v2142 = vsub.s32 0, %v2141
          %v2143 = vrot.slane %v2138, %v2142
          %v2149 = vunpack.c.l.b16 %v2134
          %v2150 = vunpack.c.l.b16 %v2135
          %v2151 = vunpack.c.l.b16 %v2136
          %v2152 = vunpack.c.l.b16 %v2137
          %v2153 = vpack.c.b16 %v2150, %v2149
          %v2154 = vpack.c.b16 %v2152, %v2151
          %v2158 = vsel %vm1166, %v2133, 0
          %2160 = vmatprep.subr.bf16.mxu0 0
          %2161 = vmatpush1.bf16.msra.mxu0 0
          %2162 = vmatprep.subr.bf16.mxu0 0
          %2163 = vmatpush1.bf16.msra.mxu0 0
          %2164 = vmatprep.subr.bf16.mxu0 0
          %2165 = vmatpush1.bf16.msra.mxu0 0
          %2166 = vmatprep.subr.bf16.mxu0 0
          %2167 = vmatpush1.bf16.msra.mxu0 0
          %2168 = vmatprep.subr.bf16.mxu0 0
          %2169 = vmatpush1.bf16.msra.mxu0 0
          %2170 = vmatprep.subr.bf16.mxu0 0
          %2171 = vmatpush1.bf16.msra.mxu0 0
          %2172 = vmatprep.subr.bf16.mxu0 0
          %2173 = vmatpush1.bf16.msra.mxu0 %v2154
          %2174 = vmatprep.subr.bf16.mxu0 0
          %2175 = vmatpush1.bf16.msra.mxu0 %v2153
          %2176 = vmatprep.subr.bf16.mxu0 0
          %2177 = vmatpush2.bf16.msra.mxu0 0
          %2178 = vmatprep.subr.bf16.mxu0 0
          %2179 = vmatpush2.bf16.msra.mxu0 0
          %2180 = vmatprep.subr.bf16.mxu0 0
          %2181 = vmatpush2.bf16.msra.mxu0 0
          %2182 = vmatprep.subr.bf16.mxu0 0
          %2183 = vmatpush2.bf16.msra.mxu0 0
          %2184 = vmatprep.subr.bf16.mxu0 0
          %2185 = vmatpush2.bf16.msra.mxu0 0
          %2186 = vmatprep.subr.bf16.mxu0 0
          %2187 = vmatpush2.bf16.msra.mxu0 0
          %2188 = vmatprep.subr.bf16.mxu0 0
          %2189 = vmatpush2.bf16.msra.mxu0 0
          %2190 = vmatprep.subr.bf16.mxu0 0
          %2191 = vmatpush2.bf16.msra.mxu0 0
          %2192 = vmatprep.mubr.bf16.mxu0 0
          %2193 = vmatmul.mubr.bf16.gmra.mxu0 %v2158
          %v2194 = vpop.f32.mrf.mxu0
          %v2195 = vadd.f32 %v2143, %v2194
          %v2196 = vpop.f32.mrf.mxu0
          %v2197 = vpop.f32.mrf.mxu0
          %v2198 = vpop.f32.mrf.mxu0
          %2199 = vdwg.mxu0
          %2200 = vst [vmem:[%s1097] sm:$0xff] %v2195
        $region152: #{tpu_custom_call.1} parent=107 // pred_fallthru
          _
        %s2201 = sand.u32 %s623, 1
        %s2202 = scalar_lea.sflag [#allocation6], %s2201
        %s2203 = sand.u32 %s623, 1
        %s2204 = smul.addr %s2203, 8
        %s2205 = scalar_lea.vmem [#allocation19], %s2204
        // Predicated region
        $region153: #{tpu_custom_call.1} parent=107 // pred_check
          %p2206 = pneg %p633
        $region154: #{tpu_custom_call.1} parent=107 // pred_check_branch
          %2208 = sbr.rel (%p2206) target = $region156
        $region155: #{tpu_custom_call.1} parent=107 // pred_region
          %s2210 = ssub.s32 128, 128
          %2211 = vsyncadd %s2202, %s2210
          %s2212 = smul.addr %s55, 128
          %s2213 = scalar_lea.hbm %s22, %s2212
          %s2215 = sshll.u32 %s2205, 4
          %s2216 = int_to_ptr.vmem [resolvable:$true] %s2215
          %2218 = dma.vmem_to_hbm [thread:$0]  %s2216, 128, %s2213, %s2202
        $region156: #{tpu_custom_call.1} parent=107 // pred_fallthru
          _
      $region108: #{tpu_custom_call.1} parent=5 // pred_fallthru
        _
      %p2219 = scmp.le.s32.totalorder 2, %s46
      // Predicated region
      $region157: #{tpu_custom_call.1} parent=5 // pred_check
        %p2220 = pneg %p2219
      $region158: #{tpu_custom_call.1} parent=5 // pred_check_branch
        %2222 = sbr.rel (%p2220) target = $region160
      $region159: #{tpu_custom_call.1} parent=5 // pred_region
        %s2223 = ssub.s32 %s46, 2
        // Predicated region
        $region161: #{tpu_custom_call.1} parent=159 // pred_check
          %p2224 = pneg %p639
        $region162: #{tpu_custom_call.1} parent=159 // pred_check_branch
          %2226 = sbr.rel (%p2224) target = $region164
        $region163: #{tpu_custom_call.1} parent=159 // pred_region
          %s2227 = sand.u32 %s624, 1
          %s2228 = scalar_lea.sflag [#allocation6], %s2227
          %s2229 = sand.u32 %s624, 1
          %s2230 = smul.addr %s2229, 8
          %s2231 = scalar_lea.vmem [#allocation19], %s2230
          %2232 = dma.done %s2228, 128
        $region164: #{tpu_custom_call.1} parent=159 // pred_fallthru
          _
      $region160: #{tpu_custom_call.1} parent=5 // pred_fallthru
        _
    $region6: #{tpu_custom_call.1} parent=1 // loop_footer
      %s50 = sadd.s32 1, %s46
    $region7: #{tpu_custom_call.1} parent=1 // loop_footer_branch
      %45 = sbr.rel target = $region3
    $region8: #{tpu_custom_call.1} parent=1 // loop_exit
      _
    %2233 = vsyncpa [#allocation5], 1
    %s2234 = scalar_lea.sflag [#allocation5], 1
    %2235 = vsyncpa %s2234, 1
    %2236 = vsyncpa [#allocation8], 1
    %s2237 = scalar_lea.sflag [#allocation8], 1
    %2238 = vsyncpa %s2237, 1
    %2239 = vsyncpa [#allocation11], 1
    %s2240 = scalar_lea.sflag [#allocation11], 1
    %2241 = vsyncpa %s2240, 1
    %2242 = vsyncpa [#allocation14], 1
    %s2243 = scalar_lea.sflag [#allocation14], 1
    %2244 = vsyncpa %s2243, 1
    %2245 = vsyncpa [#allocation17], 1
    %s2246 = scalar_lea.sflag [#allocation17], 1
    %2247 = vsyncpa %s2246, 1
    %2248 = vsyncpa [#allocation6], 1
    %s2249 = scalar_lea.sflag [#allocation6], 1
    %2250 = vsyncpa %s2249, 1

</llo_original>
